<compile_context>
chip_gen: v5e
topology: v5e:2x2
jax: 0.10.0
libtpu: 0.0.40
codegen_flags: <defaults>
</compile_context>

<pallas_src>
import jax
import jax.numpy as jnp
from jax.experimental import pallas as pl
from jax.experimental.pallas import tpu as pltpu


def _round_up(v, m):
    return (v + m - 1) // m * m


# ------------------------------- fused kernel -------------------------------

def _ce_block_kernel(x_ref, wg_ref, wl_ref, b_ref, o_ref, pad_ref):
    """One batch element per grid step.

    x_ref  : (1, H, W, C)  f32        input image (NHWC)
    wg_ref : (C, C)        bf16/f32   folded 1x1 weight (bn + conv_gap BN)
    wl_ref : (9*C, C)      bf16/f32   folded 3x3 weight, tap-major rows
    b_ref  : (2, C)        f32        row0: conv_gap bias, row1: conv_last bias
    o_ref  : (1, H, W, C)  f32        output (NHWC)
    pad_ref: (H+2, Wp, C)  bf16/f32   zero-bordered residual scratch
    """
    _, h, w, c = x_ref.shape
    m = h * w
    mm_dtype = wg_ref.dtype

    # ---- load the image as a lane-dense (H*W, C) slab ----------------------
    x = x_ref[...].reshape(m, c).astype(jnp.float32)

    # ---- bn + conv_gap (1x1) + BN + ReLU: one MXU matmul + bias ------------
    y = jnp.dot(x.astype(mm_dtype), wg_ref[...],
                preferred_element_type=jnp.float32)
    y = jnp.maximum(y + b_ref[0:1, :], 0.0)

    # ---- residual: feat = feat + x  (kept in f32) ---------------------------
    r = y + x

    # ---- conv_last (3x3, pad=1) + BN + ReLU ---------------------------------
    # Zero only the 1-px border that the taps actually read; the interior is
    # fully overwritten below, so this is correct on every grid step / core.
    wp = pad_ref.shape[1]
    zrow = jnp.zeros((1, wp, c), pad_ref.dtype)
    pad_ref[0:1, :, :] = zrow                        # top border row
    pad_ref[h + 1:h + 2, :, :] = zrow                # bottom border row
    zcol = jnp.zeros((h, 1, c), pad_ref.dtype)
    pad_ref[1:h + 1, 0:1, :] = zcol                  # left border column
    pad_ref[1:h + 1, w + 1:w + 2, :] = zcol          # right border column
    pad_ref[1:h + 1, 1:w + 1, :] = r.reshape(h, w, c).astype(pad_ref.dtype)

    # 9 shifted (H*W, C) x (C, C) matmuls accumulated in f32 (no im2col slab).
    acc = jnp.zeros((m, c), jnp.float32)
    for tap in range(9):
        di, dj = tap // 3, tap % 3
        patch = pad_ref[di:di + h, dj:dj + w, :].reshape(m, c)
        acc = acc + jnp.dot(patch, wl_ref[tap * c:(tap + 1) * c, :],
                            preferred_element_type=jnp.float32)

    z = jnp.maximum(acc + b_ref[1:2, :], 0.0)
    o_ref[...] = z.reshape(1, h, w, c).astype(o_ref.dtype)


# --------------------------------- wrappers ----------------------------------

def _fold_bn(p, eps):
    gamma, beta, mean, var = p
    scale = gamma / jnp.sqrt(var + eps)
    bias = beta - mean * scale
    return scale, bias


def ce_block_forward_nhwc(x_nhwc, params, *, eps=1e-5, use_bf16_matmul=True):
    """CEBlock forward on NHWC input (C last = lane dim = 128)."""
    n, h, w, c = x_nhwc.shape
    mm_dtype = jnp.bfloat16 if use_bf16_matmul else jnp.float32

    # Fold all three BatchNorms (inference mode) into weights / biases.
    s_bn, b_bn = _fold_bn(params["bn"], eps)
    s_g, b_g = _fold_bn(params["conv_gap"]["bn"], eps)
    s_l, b_l = _fold_bn(params["conv_last"]["bn"], eps)

    # conv_gap: y = relu( s_g * (Wg @ (s_bn*x + b_bn)) + b_g )
    #             = relu( x @ Wg' + bias_gap )
    wg_oi = params["conv_gap"]["w"].reshape(c, c)               # (Cout, Cin)
    wg = (wg_oi.T * s_bn[:, None]) * s_g[None, :]               # (Cin, Cout)
    bias_gap = (wg_oi @ b_bn) * s_g + b_g                       # (Cout,)

    # conv_last: fold the output BN scale into the weight columns.
    wl = jnp.transpose(params["conv_last"]["w"], (2, 3, 1, 0))  # (3,3,Cin,Cout)
    wl = wl.reshape(9 * c, c) * s_l[None, :]                    # (9*Cin, Cout)
    bias_last = b_l

    biases = jnp.stack([bias_gap, bias_last], axis=0).astype(jnp.float32)
    wg = wg.astype(mm_dtype)       # pre-cast once in the wrapper (not per step)
    wl = wl.astype(mm_dtype)

    w_pad = _round_up(w + 2, 8)    # sublane-aligned padded width

    out = pl.pallas_call(
        _ce_block_kernel,
        out_shape=jax.ShapeDtypeStruct((n, h, w, c), x_nhwc.dtype),
        grid=(n,),
        in_specs=[
            pl.BlockSpec((1, h, w, c), lambda i: (i, 0, 0, 0)),   # x (NHWC)
            pl.BlockSpec((c, c), lambda i: (0, 0)),               # folded 1x1 W
            pl.BlockSpec((9 * c, c), lambda i: (0, 0)),           # folded 3x3 W
            pl.BlockSpec((2, c), lambda i: (0, 0)),               # biases
        ],
        out_specs=pl.BlockSpec((1, h, w, c), lambda i: (i, 0, 0, 0)),
        scratch_shapes=[pltpu.VMEM((h + 2, w_pad, c), mm_dtype)],
        compiler_params=pltpu.CompilerParams(
            dimension_semantics=("parallel",)),
    )(x_nhwc, wg, wl, biases)
    return out


def ce_block_forward(x_nchw, params, *, eps=1e-5, use_bf16_matmul=True):
    """NCHW wrapper matching the PyTorch interface.

    NOTE: the two transposes are HBM round-trips outside the fused kernel; if
    the surrounding network stays NHWC, call ce_block_forward_nhwc directly.
    """
    x_nhwc = jnp.transpose(x_nchw, (0, 2, 3, 1))
    out = ce_block_forward_nhwc(x_nhwc, params, eps=eps,
                                use_bf16_matmul=use_bf16_matmul)
    return jnp.transpose(out, (0, 3, 1, 2))


# ------------------------------ params / reference ---------------------------

def init_ce_block_params(key, c=128):
    kb, kwg, kbg, kwl, kbl = jax.random.split(key, 5)

    def bn_p(k):
        kg, kb_, km, kv = jax.random.split(k, 4)
        gamma = 1.0 + 0.1 * jax.random.normal(kg, (c,), jnp.float32)
        beta = 0.1 * jax.random.normal(kb_, (c,), jnp.float32)
        mean = 0.1 * jax.random.normal(km, (c,), jnp.float32)
        var = jax.random.uniform(kv, (c,), jnp.float32, minval=0.5, maxval=1.5)
        return (gamma, beta, mean, var)

    return {
        "bn": bn_p(kb),
        "conv_gap": {"w": 0.05 * jax.random.normal(kwg, (c, c, 1, 1), jnp.float32),
                     "bn": bn_p(kbg)},
        "conv_last": {"w": 0.03 * jax.random.normal(kwl, (c, c, 3, 3), jnp.float32),
                      "bn": bn_p(kbl)},
    }


def ce_block_reference(x_nchw, params, eps=1e-5):
    """Pure-JAX (XLA) reference of the PyTorch CEBlock forward, NCHW."""
    def bn_apply(x, p):
        gamma, beta, mean, var = p
        s = gamma / jnp.sqrt(var + eps)
        b = beta - mean * s
        return x * s[None, :, None, None] + b[None, :, None, None]

    def conv_bn_relu(x, weight, bnp, padding):
        y = jax.lax.conv_general_dilated(
            x, weight, window_strides=(1, 1),
            padding=[(padding, padding), (padding, padding)],
            dimension_numbers=("NCHW", "OIHW", "NCHW"),
            precision=jax.lax.Precision.HIGHEST)
        return jnp.maximum(bn_apply(y, bnp), 0.0)

    feat = bn_apply(x_nchw, params["bn"])
    feat = conv_bn_relu(feat, params["conv_gap"]["w"], params["conv_gap"]["bn"], 0)
    feat = feat + x_nchw
    feat = conv_bn_relu(feat, params["conv_last"]["w"], params["conv_last"]["bn"], 1)
    return feat


# ----------------------------------- main -------------------------------------

if __name__ == "__main__":
    key = jax.random.PRNGKey(0)
    k_x, k_p = jax.random.split(key)

    n, c, h, w = 2, 128, 8, 8       # C is fixed to 128 by the CEBlock definition
    x = jax.random.normal(k_x, (n, c, h, w), jnp.float32)   # NCHW (PyTorch layout)
    params = init_ce_block_params(k_p, c)

    ref = ce_block_reference(x, params)

    # default path: bf16 MXU operands, f32 accumulation + f32 element-wise math
    out = jax.block_until_ready(ce_block_forward(x, params))
    assert out.shape == (n, c, h, w), out.shape
    assert bool(jnp.all(jnp.isfinite(out)))
    assert bool(jnp.all(out >= 0.0))                         # final ReLU
    assert bool(jnp.allclose(out, ref, atol=1e-1, rtol=1e-1)), (
        f"bf16 path max abs err {float(jnp.max(jnp.abs(out - ref)))}")

    # full-f32 path (tighter check)
    out32 = jax.block_until_ready(
        ce_block_forward(x, params, use_bf16_matmul=False))
    assert bool(jnp.allclose(out32, ref, atol=5e-2, rtol=5e-2)), (
        f"f32 path max abs err {float(jnp.max(jnp.abs(out32 - ref)))}")

    print("KERNEL_OK")
</pallas_src>

<mosaic_0001>
module attributes {stable_mosaic.version = 11 : i64} {
  func.func @_ce_block_kernel(%arg0: i32, %arg1: memref<1x8x8x128xf32, #tpu.memory_space<vmem>>, %arg2: memref<128x128xbf16, #tpu.memory_space<vmem>>, %arg3: memref<1152x128xbf16, #tpu.memory_space<vmem>>, %arg4: memref<2x128xf32, #tpu.memory_space<vmem>>, %arg5: memref<1x8x8x128xf32, #tpu.memory_space<vmem>>, %arg6: memref<10x16x128xbf16, #tpu.memory_space<vmem>>) attributes {dimension_semantics = [#tpu.dimension_semantics<parallel>], iteration_bounds = array<i64: 2>, scalar_prefetch = 0 : i64, scratch_operands = 1 : i64, tpu.core_type = #tpu.core_type<tc>, window_params = [{transform_indices = @transform_0, window_bounds = array<i64: 1, 8, 8, 128>}, {pipeline_mode = #tpu.pipeline_mode<synchronous>, transform_indices = @transform_1, window_bounds = array<i64: 128, 128>}, {pipeline_mode = #tpu.pipeline_mode<synchronous>, transform_indices = @transform_2, window_bounds = array<i64: 1152, 128>}, {pipeline_mode = #tpu.pipeline_mode<synchronous>, transform_indices = @transform_3, window_bounds = array<i64: 2, 128>}, {transform_indices = @transform_4, window_bounds = array<i64: 1, 8, 8, 128>}]} {
    %c0 = arith.constant 0 : index
    %c0_0 = arith.constant 0 : index
    %c0_1 = arith.constant 0 : index
    %c0_2 = arith.constant 0 : index
    %0 = vector.load %arg1[%c0, %c0_0, %c0_1, %c0_2] : memref<1x8x8x128xf32, #tpu.memory_space<vmem>>, vector<1x8x8x128xf32>
    %1 = vector.shape_cast %0 : vector<1x8x8x128xf32> to vector<64x128xf32>
    %2 = arith.truncf %1 : vector<64x128xf32> to vector<64x128xbf16>
    %c0_3 = arith.constant 0 : index
    %c0_4 = arith.constant 0 : index
    %3 = vector.load %arg2[%c0_3, %c0_4] : memref<128x128xbf16, #tpu.memory_space<vmem>>, vector<128x128xbf16>
    %cst = arith.constant dense<0.000000e+00> : vector<64x128xf32>
    %4 = tpu.matmul %2, %3, %cst {dimension_numbers = #tpu.dot_dimension_numbers<[1], [0], [0], [1], [0, 0, 1, 1], [], []>} : vector<64x128xbf16>, vector<128x128xbf16>, vector<64x128xf32> -> vector<64x128xf32>
    %c0_5 = arith.constant 0 : index
    %c0_6 = arith.constant 0 : index
    %5 = vector.load %arg4[%c0_5, %c0_6] : memref<2x128xf32, #tpu.memory_space<vmem>>, vector<1x128xf32>
    %6 = vector.broadcast %5 : vector<1x128xf32> to vector<64x128xf32>
    %7 = arith.addf %4, %6 : vector<64x128xf32>
    %cst_7 = arith.constant 0.000000e+00 : f32
    %8 = vector.broadcast %cst_7 : f32 to vector<64x128xf32>
    %9 = arith.maximumf %7, %8 : vector<64x128xf32>
    %10 = arith.addf %9, %1 : vector<64x128xf32>
    %cst_8 = arith.constant 0.000000e+00 : bf16
    %11 = vector.broadcast %cst_8 : bf16 to vector<1x16x128xbf16>
    %c0_9 = arith.constant 0 : index
    %c0_10 = arith.constant 0 : index
    %c0_11 = arith.constant 0 : index
    %12 = vector.load %arg6[%c0_9, %c0_10, %c0_11] : memref<10x16x128xbf16, #tpu.memory_space<vmem>>, vector<1x16x128xbf16>
    tpu.vector_store %arg6[%c0_9, %c0_10, %c0_11], %11 {strides = array<i32>} : memref<10x16x128xbf16, #tpu.memory_space<vmem>>, vector<1x16x128xbf16>,
    %c9 = arith.constant 9 : index
    %c0_12 = arith.constant 0 : index
    %c0_13 = arith.constant 0 : index
    %13 = vector.load %arg6[%c9, %c0_12, %c0_13] : memref<10x16x128xbf16, #tpu.memory_space<vmem>>, vector<1x16x128xbf16>
    tpu.vector_store %arg6[%c9, %c0_12, %c0_13], %11 {strides = array<i32>} : memref<10x16x128xbf16, #tpu.memory_space<vmem>>, vector<1x16x128xbf16>,
    %cst_14 = arith.constant 0.000000e+00 : bf16
    %14 = vector.broadcast %cst_14 : bf16 to vector<8x1x128xbf16>
    %c1 = arith.constant 1 : index
    %c0_15 = arith.constant 0 : index
    %c0_16 = arith.constant 0 : index
    %15 = vector.load %arg6[%c1, %c0_15, %c0_16] : memref<10x16x128xbf16, #tpu.memory_space<vmem>>, vector<8x1x128xbf16>
    tpu.vector_store %arg6[%c1, %c0_15, %c0_16], %14 {strides = array<i32>} : memref<10x16x128xbf16, #tpu.memory_space<vmem>>, vector<8x1x128xbf16>,
    %c1_17 = arith.constant 1 : index
    %c9_18 = arith.constant 9 : index
    %c0_19 = arith.constant 0 : index
    %16 = vector.load %arg6[%c1_17, %c9_18, %c0_19] : memref<10x16x128xbf16, #tpu.memory_space<vmem>>, vector<8x1x128xbf16>
    tpu.vector_store %arg6[%c1_17, %c9_18, %c0_19], %14 {strides = array<i32>} : memref<10x16x128xbf16, #tpu.memory_space<vmem>>, vector<8x1x128xbf16>,
    %17 = vector.shape_cast %10 : vector<64x128xf32> to vector<8x8x128xf32>
    %18 = arith.truncf %17 : vector<8x8x128xf32> to vector<8x8x128xbf16>
    %c1_20 = arith.constant 1 : index
    %c1_21 = arith.constant 1 : index
    %c0_22 = arith.constant 0 : index
    %19 = vector.load %arg6[%c1_20, %c1_21, %c0_22] : memref<10x16x128xbf16, #tpu.memory_space<vmem>>, vector<8x8x128xbf16>
    tpu.vector_store %arg6[%c1_20, %c1_21, %c0_22], %18 {strides = array<i32>} : memref<10x16x128xbf16, #tpu.memory_space<vmem>>, vector<8x8x128xbf16>,
    %cst_23 = arith.constant 0.000000e+00 : f32
    %20 = vector.broadcast %cst_23 : f32 to vector<64x128xf32>
    %c0_24 = arith.constant 0 : index
    %c0_25 = arith.constant 0 : index
    %c0_26 = arith.constant 0 : index
    %21 = vector.load %arg6[%c0_24, %c0_25, %c0_26] : memref<10x16x128xbf16, #tpu.memory_space<vmem>>, vector<8x8x128xbf16>
    %22 = vector.shape_cast %21 : vector<8x8x128xbf16> to vector<64x128xbf16>
    %c0_27 = arith.constant 0 : index
    %c0_28 = arith.constant 0 : index
    %23 = vector.load %arg3[%c0_27, %c0_28] : memref<1152x128xbf16, #tpu.memory_space<vmem>>, vector<128x128xbf16>
    %cst_29 = arith.constant dense<0.000000e+00> : vector<64x128xf32>
    %24 = tpu.matmul %22, %23, %cst_29 {dimension_numbers = #tpu.dot_dimension_numbers<[1], [0], [0], [1], [0, 0, 1, 1], [], []>} : vector<64x128xbf16>, vector<128x128xbf16>, vector<64x128xf32> -> vector<64x128xf32>
    %25 = arith.addf %20, %24 : vector<64x128xf32>
    %c0_30 = arith.constant 0 : index
    %c1_31 = arith.constant 1 : index
    %c0_32 = arith.constant 0 : index
    %26 = vector.load %arg6[%c0_30, %c1_31, %c0_32] : memref<10x16x128xbf16, #tpu.memory_space<vmem>>, vector<8x8x128xbf16>
    %27 = vector.shape_cast %26 : vector<8x8x128xbf16> to vector<64x128xbf16>
    %c128 = arith.constant 128 : index
    %c0_33 = arith.constant 0 : index
    %28 = vector.load %arg3[%c128, %c0_33] : memref<1152x128xbf16, #tpu.memory_space<vmem>>, vector<128x128xbf16>
    %cst_34 = arith.constant dense<0.000000e+00> : vector<64x128xf32>
    %29 = tpu.matmul %27, %28, %cst_34 {dimension_numbers = #tpu.dot_dimension_numbers<[1], [0], [0], [1], [0, 0, 1, 1], [], []>} : vector<64x128xbf16>, vector<128x128xbf16>, vector<64x128xf32> -> vector<64x128xf32>
    %30 = arith.addf %25, %29 : vector<64x128xf32>
    %c0_35 = arith.constant 0 : index
    %c2 = arith.constant 2 : index
    %c0_36 = arith.constant 0 : index
    %31 = vector.load %arg6[%c0_35, %c2, %c0_36] : memref<10x16x128xbf16, #tpu.memory_space<vmem>>, vector<8x8x128xbf16>
    %32 = vector.shape_cast %31 : vector<8x8x128xbf16> to vector<64x128xbf16>
    %c256 = arith.constant 256 : index
    %c0_37 = arith.constant 0 : index
    %33 = vector.load %arg3[%c256, %c0_37] : memref<1152x128xbf16, #tpu.memory_space<vmem>>, vector<128x128xbf16>
    %cst_38 = arith.constant dense<0.000000e+00> : vector<64x128xf32>
    %34 = tpu.matmul %32, %33, %cst_38 {dimension_numbers = #tpu.dot_dimension_numbers<[1], [0], [0], [1], [0, 0, 1, 1], [], []>} : vector<64x128xbf16>, vector<128x128xbf16>, vector<64x128xf32> -> vector<64x128xf32>
    %35 = arith.addf %30, %34 : vector<64x128xf32>
    %c1_39 = arith.constant 1 : index
    %c0_40 = arith.constant 0 : index
    %c0_41 = arith.constant 0 : index
    %36 = vector.load %arg6[%c1_39, %c0_40, %c0_41] : memref<10x16x128xbf16, #tpu.memory_space<vmem>>, vector<8x8x128xbf16>
    %37 = vector.shape_cast %36 : vector<8x8x128xbf16> to vector<64x128xbf16>
    %c384 = arith.constant 384 : index
    %c0_42 = arith.constant 0 : index
    %38 = vector.load %arg3[%c384, %c0_42] : memref<1152x128xbf16, #tpu.memory_space<vmem>>, vector<128x128xbf16>
    %cst_43 = arith.constant dense<0.000000e+00> : vector<64x128xf32>
    %39 = tpu.matmul %37, %38, %cst_43 {dimension_numbers = #tpu.dot_dimension_numbers<[1], [0], [0], [1], [0, 0, 1, 1], [], []>} : vector<64x128xbf16>, vector<128x128xbf16>, vector<64x128xf32> -> vector<64x128xf32>
    %40 = arith.addf %35, %39 : vector<64x128xf32>
    %c1_44 = arith.constant 1 : index
    %c1_45 = arith.constant 1 : index
    %c0_46 = arith.constant 0 : index
    %41 = vector.load %arg6[%c1_44, %c1_45, %c0_46] : memref<10x16x128xbf16, #tpu.memory_space<vmem>>, vector<8x8x128xbf16>
    %42 = vector.shape_cast %41 : vector<8x8x128xbf16> to vector<64x128xbf16>
    %c512 = arith.constant 512 : index
    %c0_47 = arith.constant 0 : index
    %43 = vector.load %arg3[%c512, %c0_47] : memref<1152x128xbf16, #tpu.memory_space<vmem>>, vector<128x128xbf16>
    %cst_48 = arith.constant dense<0.000000e+00> : vector<64x128xf32>
    %44 = tpu.matmul %42, %43, %cst_48 {dimension_numbers = #tpu.dot_dimension_numbers<[1], [0], [0], [1], [0, 0, 1, 1], [], []>} : vector<64x128xbf16>, vector<128x128xbf16>, vector<64x128xf32> -> vector<64x128xf32>
    %45 = arith.addf %40, %44 : vector<64x128xf32>
    %c1_49 = arith.constant 1 : index
    %c2_50 = arith.constant 2 : index
    %c0_51 = arith.constant 0 : index
    %46 = vector.load %arg6[%c1_49, %c2_50, %c0_51] : memref<10x16x128xbf16, #tpu.memory_space<vmem>>, vector<8x8x128xbf16>
    %47 = vector.shape_cast %46 : vector<8x8x128xbf16> to vector<64x128xbf16>
    %c640 = arith.constant 640 : index
    %c0_52 = arith.constant 0 : index
    %48 = vector.load %arg3[%c640, %c0_52] : memref<1152x128xbf16, #tpu.memory_space<vmem>>, vector<128x128xbf16>
    %cst_53 = arith.constant dense<0.000000e+00> : vector<64x128xf32>
    %49 = tpu.matmul %47, %48, %cst_53 {dimension_numbers = #tpu.dot_dimension_numbers<[1], [0], [0], [1], [0, 0, 1, 1], [], []>} : vector<64x128xbf16>, vector<128x128xbf16>, vector<64x128xf32> -> vector<64x128xf32>
    %50 = arith.addf %45, %49 : vector<64x128xf32>
    %c2_54 = arith.constant 2 : index
    %c0_55 = arith.constant 0 : index
    %c0_56 = arith.constant 0 : index
    %51 = vector.load %arg6[%c2_54, %c0_55, %c0_56] : memref<10x16x128xbf16, #tpu.memory_space<vmem>>, vector<8x8x128xbf16>
    %52 = vector.shape_cast %51 : vector<8x8x128xbf16> to vector<64x128xbf16>
    %c768 = arith.constant 768 : index
    %c0_57 = arith.constant 0 : index
    %53 = vector.load %arg3[%c768, %c0_57] : memref<1152x128xbf16, #tpu.memory_space<vmem>>, vector<128x128xbf16>
    %cst_58 = arith.constant dense<0.000000e+00> : vector<64x128xf32>
    %54 = tpu.matmul %52, %53, %cst_58 {dimension_numbers = #tpu.dot_dimension_numbers<[1], [0], [0], [1], [0, 0, 1, 1], [], []>} : vector<64x128xbf16>, vector<128x128xbf16>, vector<64x128xf32> -> vector<64x128xf32>
    %55 = arith.addf %50, %54 : vector<64x128xf32>
    %c2_59 = arith.constant 2 : index
    %c1_60 = arith.constant 1 : index
    %c0_61 = arith.constant 0 : index
    %56 = vector.load %arg6[%c2_59, %c1_60, %c0_61] : memref<10x16x128xbf16, #tpu.memory_space<vmem>>, vector<8x8x128xbf16>
    %57 = vector.shape_cast %56 : vector<8x8x128xbf16> to vector<64x128xbf16>
    %c896 = arith.constant 896 : index
    %c0_62 = arith.constant 0 : index
    %58 = vector.load %arg3[%c896, %c0_62] : memref<1152x128xbf16, #tpu.memory_space<vmem>>, vector<128x128xbf16>
    %cst_63 = arith.constant dense<0.000000e+00> : vector<64x128xf32>
    %59 = tpu.matmul %57, %58, %cst_63 {dimension_numbers = #tpu.dot_dimension_numbers<[1], [0], [0], [1], [0, 0, 1, 1], [], []>} : vector<64x128xbf16>, vector<128x128xbf16>, vector<64x128xf32> -> vector<64x128xf32>
    %60 = arith.addf %55, %59 : vector<64x128xf32>
    %c2_64 = arith.constant 2 : index
    %c2_65 = arith.constant 2 : index
    %c0_66 = arith.constant 0 : index
    %61 = vector.load %arg6[%c2_64, %c2_65, %c0_66] : memref<10x16x128xbf16, #tpu.memory_space<vmem>>, vector<8x8x128xbf16>
    %62 = vector.shape_cast %61 : vector<8x8x128xbf16> to vector<64x128xbf16>
    %c1024 = arith.constant 1024 : index
    %c0_67 = arith.constant 0 : index
    %63 = vector.load %arg3[%c1024, %c0_67] : memref<1152x128xbf16, #tpu.memory_space<vmem>>, vector<128x128xbf16>
    %cst_68 = arith.constant dense<0.000000e+00> : vector<64x128xf32>
    %64 = tpu.matmul %62, %63, %cst_68 {dimension_numbers = #tpu.dot_dimension_numbers<[1], [0], [0], [1], [0, 0, 1, 1], [], []>} : vector<64x128xbf16>, vector<128x128xbf16>, vector<64x128xf32> -> vector<64x128xf32>
    %65 = arith.addf %60, %64 : vector<64x128xf32>
    %c1_69 = arith.constant 1 : index
    %c0_70 = arith.constant 0 : index
    %66 = vector.load %arg4[%c1_69, %c0_70] : memref<2x128xf32, #tpu.memory_space<vmem>>, vector<1x128xf32>
    %67 = vector.broadcast %66 : vector<1x128xf32> to vector<64x128xf32>
    %68 = arith.addf %65, %67 : vector<64x128xf32>
    %cst_71 = arith.constant 0.000000e+00 : f32
    %69 = vector.broadcast %cst_71 : f32 to vector<64x128xf32>
    %70 = arith.maximumf %68, %69 : vector<64x128xf32>
    %71 = vector.shape_cast %70 : vector<64x128xf32> to vector<1x8x8x128xf32>
    %c0_72 = arith.constant 0 : index
    %c0_73 = arith.constant 0 : index
    %c0_74 = arith.constant 0 : index
    %c0_75 = arith.constant 0 : index
    %72 = vector.load %arg5[%c0_72, %c0_73, %c0_74, %c0_75] : memref<1x8x8x128xf32, #tpu.memory_space<vmem>>, vector<1x8x8x128xf32>
    tpu.vector_store %arg5[%c0_72, %c0_73, %c0_74, %c0_75], %71 {strides = array<i32>} : memref<1x8x8x128xf32, #tpu.memory_space<vmem>>, vector<1x8x8x128xf32>,
    return
  }
  func.func @transform_0(%arg0: i32) -> (i32, i32, i32, i32) {
    %c0_i32 = arith.constant 0 : i32
    %c0_i32_0 = arith.constant 0 : i32
    %c0_i32_1 = arith.constant 0 : i32
    %c0_i32_2 = arith.constant 0 : i32
    return %arg0, %c0_i32, %c0_i32_0, %c0_i32_1 : i32, i32, i32, i32
  }
  func.func @transform_1(%arg0: i32) -> (i32, i32) {
    %c0_i32 = arith.constant 0 : i32
    %c0_i32_0 = arith.constant 0 : i32
    %c0_i32_1 = arith.constant 0 : i32
    return %c0_i32, %c0_i32_0 : i32, i32
  }
  func.func @transform_2(%arg0: i32) -> (i32, i32) {
    %c0_i32 = arith.constant 0 : i32
    %c0_i32_0 = arith.constant 0 : i32
    %c0_i32_1 = arith.constant 0 : i32
    return %c0_i32, %c0_i32_0 : i32, i32
  }
  func.func @transform_3(%arg0: i32) -> (i32, i32) {
    %c0_i32 = arith.constant 0 : i32
    %c0_i32_0 = arith.constant 0 : i32
    %c0_i32_1 = arith.constant 0 : i32
    return %c0_i32, %c0_i32_0 : i32, i32
  }
  func.func @transform_4(%arg0: i32) -> (i32, i32, i32, i32) {
    %c0_i32 = arith.constant 0 : i32
    %c0_i32_0 = arith.constant 0 : i32
    %c0_i32_1 = arith.constant 0 : i32
    %c0_i32_2 = arith.constant 0 : i32
    return %arg0, %c0_i32, %c0_i32_0, %c0_i32_1 : i32, i32, i32, i32
  }
}

</mosaic_0001>

<llo_original>
// kernel: tpu_custom_call.1
$region0: #{tpu_custom_call.1}
  #allocation0 [shape = 'u32[]', space=smem, size = 0x4, offset = 0x4, fixed_abs, tag = 'smem constant byte address 0x4 - core index']
  #allocation1 [shape = 'u32[72,128]{1,0:T(1,128)}', space=vmem, size = 0x9000, scoped, tag = 'internal scratch']
  #allocation2 [shape = 'bf16[10,16,128]{2,1,0:T(8,128)(2,1)}', space=vmem, size = 0xa000, scoped, tag = 'scratch operand']
  %s0 = inlined_call_operand.hbm [shape: f32[2,8,8,128], index: 0, kind: input, shape index: {}]
  %s1 = inlined_call_operand.hbm [shape: bf16[128,128], index: 1, kind: input, shape index: {}]
  %s2 = inlined_call_operand.hbm [shape: bf16[1152,128], index: 2, kind: input, shape index: {}]
  %s3 = inlined_call_operand.vmem [shape: f32[2,128], index: 3, kind: input, shape index: {}]
  %s4 = inlined_call_operand.hbm [shape: f32[2,8,8,128], index: 4, kind: output, shape index: {}]
  %s5 = sld [smem:[#allocation0]]
  $region61: #{tpu_custom_call.1} parent=0
    _
  %s7 = ssub.s32 1, %s5
  %s8 = scalar_select 0, %s7, %s5
  $region1: #{tpu_custom_call.1} parent=0
    #allocation3 [shape = 'u8[65536]{0}', space=vmem, size = 0x10000, scoped, tag = 'input window, operand 0']
    #allocation4 [shape = 's32[2]{0}', space=sflag, size = 0x8, scoped, tag = 'scoped memory for tpu_custom_call.1']
    #allocation5 [shape = 's32[2]{0}', space=sflag, size = 0x8, scoped, tag = 'scoped memory for tpu_custom_call.1']
    #allocation6 [shape = 'u8[32768]{0}', space=vmem, size = 0x8000, scoped, tag = 'input window, operand 1, single buffered']
    #allocation7 [shape = 's32[1]{0}', space=sflag, size = 0x4, scoped, tag = 'scoped memory for tpu_custom_call.1']
    #allocation8 [shape = 'u8[294912]{0}', space=vmem, size = 0x48000, scoped, tag = 'input window, operand 2, single buffered']
    #allocation9 [shape = 'u8[65536]{0}', space=vmem, size = 0x10000, scoped, tag = 'output window, operand 0']
    %9 = vsyncpa [#allocation4], 0
    %s10 = scalar_lea.sflag [#allocation4], 1
    %11 = vsyncpa %s10, 0
    %12 = vsyncpa [#allocation7], 0
    %13 = vsyncpa [#allocation5], 0
    %s14 = scalar_lea.sflag [#allocation5], 1
    %15 = vsyncpa %s14, 0
    loop: start=0, step=1, limit=4
    $region2: #{tpu_custom_call.1} parent=1 // loop_pre_header
      _
    $region3: #{tpu_custom_call.1} parent=1 // loop_header
      %s17 = sphi 0, %s21
      %p18 = scmp.ge.s32.totalorder %s17, 4
      %s27 = sphi 0, %s29
      %s30 = sphi 0, %s27
      %s31 = sphi 0, %s30
      %s47 = sphi 0, %s31
      %s51 = sphi 0, %s51
      %s53 = sphi 0, %s51
      %s54 = sphi 0, %s53
      %s68 = sphi 0, %s54
      %s72 = sphi 0, %s72
      %s74 = sphi 0, %s72
      %s75 = sphi 0, %s74
      %s89 = sphi 0, %s75
      %s93 = sphi 0, %s93
      %s95 = sphi 0, %s93
      %s96 = sphi 0, %s95
      %s110 = sphi 0, %s96
      %s116 = sphi 0, %s118
      %s119 = sphi 0, %s116
      %s120 = sphi 0, %s119
      %s136 = sphi 0, %s120
    $region4: #{tpu_custom_call.1} parent=1 // loop_header_branch
      %20 = sbr.rel (%p18) target = $region8
    $region5: #{tpu_custom_call.1} parent=1 // loop_body
      %s22 = ssub.s32 %s17, 1
      %s23 = ssub.s32 %s17, 2
      %s24 = sadd.s32 %s17, 1
      %s25 = ssub.s32 %s17, %s24
      %p26 = scmp.eq.s32.totalorder %s25, 0
      %s28 = sadd.s32 %s27, 1
      %s29 = scalar_select %p26, %s27, %s28
      %p32 = pneg %p26
      %p33 = scmp.eq.s32.totalorder %s17, 1
      %p34 = por %p32, %p33
      %p35 = scmp.ne.s32.totalorder %s27, %s30
      %p36 = scmp.eq.s32.totalorder %s17, 0
      %p37 = por %p35, %p36
      %p38 = scmp.ne.s32.totalorder %s27, %s30
      %p39 = scmp.eq.s32.totalorder %s22, 1
      %p40 = por %p38, %p39
      %p41 = scmp.ne.s32.totalorder %s30, %s31
      %p42 = scmp.eq.s32.totalorder %s22, 0
      %p43 = por %p41, %p42
      %p44 = scmp.ne.s32.totalorder %s30, %s31
      %p45 = scmp.eq.s32.totalorder %s23, 1
      %p46 = por %p44, %p45
      %p48 = scmp.ne.s32.totalorder %s31, %s47
      %p49 = scmp.eq.s32.totalorder %s23, 0
      %p50 = por %p48, %p49
      %s52 = sadd.s32 %s51, 1
      %p55 = scmp.eq.s32.totalorder %s17, 1
      %p56 = scmp.ne.s32.totalorder %s51, %s53
      %p57 = scmp.eq.s32.totalorder %s17, 0
      %p58 = por %p56, %p57
      %p59 = scmp.ne.s32.totalorder %s51, %s53
      %p60 = scmp.eq.s32.totalorder %s22, 1
      %p61 = por %p59, %p60
      %p62 = scmp.ne.s32.totalorder %s53, %s54
      %p63 = scmp.eq.s32.totalorder %s22, 0
      %p64 = por %p62, %p63
      %p65 = scmp.ne.s32.totalorder %s53, %s54
      %p66 = scmp.eq.s32.totalorder %s23, 1
      %p67 = por %p65, %p66
      %p69 = scmp.ne.s32.totalorder %s54, %s68
      %p70 = scmp.eq.s32.totalorder %s23, 0
      %p71 = por %p69, %p70
      %s73 = sadd.s32 %s72, 1
      %p76 = scmp.eq.s32.totalorder %s17, 1
      %p77 = scmp.ne.s32.totalorder %s72, %s74
      %p78 = scmp.eq.s32.totalorder %s17, 0
      %p79 = por %p77, %p78
      %p80 = scmp.ne.s32.totalorder %s72, %s74
      %p81 = scmp.eq.s32.totalorder %s22, 1
      %p82 = por %p80, %p81
      %p83 = scmp.ne.s32.totalorder %s74, %s75
      %p84 = scmp.eq.s32.totalorder %s22, 0
      %p85 = por %p83, %p84
      %p86 = scmp.ne.s32.totalorder %s74, %s75
      %p87 = scmp.eq.s32.totalorder %s23, 1
      %p88 = por %p86, %p87
      %p90 = scmp.ne.s32.totalorder %s75, %s89
      %p91 = scmp.eq.s32.totalorder %s23, 0
      %p92 = por %p90, %p91
      %s94 = sadd.s32 %s93, 1
      %p97 = scmp.eq.s32.totalorder %s17, 1
      %p98 = scmp.ne.s32.totalorder %s93, %s95
      %p99 = scmp.eq.s32.totalorder %s17, 0
      %p100 = por %p98, %p99
      %p101 = scmp.ne.s32.totalorder %s93, %s95
      %p102 = scmp.eq.s32.totalorder %s22, 1
      %p103 = por %p101, %p102
      %p104 = scmp.ne.s32.totalorder %s95, %s96
      %p105 = scmp.eq.s32.totalorder %s22, 0
      %p106 = por %p104, %p105
      %p107 = scmp.ne.s32.totalorder %s95, %s96
      %p108 = scmp.eq.s32.totalorder %s23, 1
      %p109 = por %p107, %p108
      %p111 = scmp.ne.s32.totalorder %s96, %s110
      %p112 = scmp.eq.s32.totalorder %s23, 0
      %p113 = por %p111, %p112
      %s114 = ssub.s32 %s17, %s24
      %p115 = scmp.eq.s32.totalorder %s114, 0
      %s117 = sadd.s32 %s116, 1
      %s118 = scalar_select %p115, %s116, %s117
      %p121 = pneg %p115
      %p122 = scmp.eq.s32.totalorder %s17, 1
      %p123 = por %p121, %p122
      %p124 = scmp.ne.s32.totalorder %s116, %s119
      %p125 = scmp.eq.s32.totalorder %s17, 0
      %p126 = por %p124, %p125
      %p127 = scmp.ne.s32.totalorder %s116, %s119
      %p128 = scmp.eq.s32.totalorder %s22, 1
      %p129 = por %p127, %p128
      %p130 = scmp.ne.s32.totalorder %s119, %s120
      %p131 = scmp.eq.s32.totalorder %s22, 0
      %p132 = por %p130, %p131
      %p133 = scmp.ne.s32.totalorder %s119, %s120
      %p134 = scmp.eq.s32.totalorder %s23, 1
      %p135 = por %p133, %p134
      %p137 = scmp.ne.s32.totalorder %s120, %s136
      %p138 = scmp.eq.s32.totalorder %s23, 0
      %p139 = por %p137, %p138
      %p140 = scmp.le.s32.totalorder 1, %s17
      %p141 = scmp.lt.s32.totalorder %s17, 3
      %p142 = pnand %p140, %p141
      %p143 = pneg %p142
      // Predicated region
      $region9: #{tpu_custom_call.1} parent=5 // pred_check
        _
      $region10: #{tpu_custom_call.1} parent=5 // pred_check_branch
        %145 = sbr.rel (%p142) target = $region12
      $region11: #{tpu_custom_call.1} parent=5 // pred_region
        %s146 = ssub.s32 %s17, 1
        // Predicated region
        $region13: #{tpu_custom_call.1} parent=11 // pred_check
          %p147 = pneg %p64
        $region14: #{tpu_custom_call.1} parent=11 // pred_check_branch
          %149 = sbr.rel (%p147) target = $region16
        $region15: #{tpu_custom_call.1} parent=11 // pred_region
          %151 = vsyncadd [#allocation7], 0
          %s152 = sshll.u32 %s1, 4
          %s153 = int_to_ptr.hbm [resolvable:$true] %s152
          %s154 = sshll.u32 [#allocation6], 4
          %s155 = int_to_ptr.vmem [resolvable:$true] %s154
          %160 = dma.hbm_to_vmem [thread:$0]  %s153, 1024, %s155, [#allocation7], 64, 64, 4
        $region16: #{tpu_custom_call.1} parent=11 // pred_fallthru
          _
        // Predicated region
        $region17: #{tpu_custom_call.1} parent=11 // pred_check
          %p161 = pneg %p85
        $region18: #{tpu_custom_call.1} parent=11 // pred_check_branch
          %163 = sbr.rel (%p161) target = $region20
        $region19: #{tpu_custom_call.1} parent=11 // pred_region
          %165 = vsyncadd [#allocation7], 0
          %s166 = sshll.u32 %s2, 4
          %s167 = int_to_ptr.hbm [resolvable:$true] %s166
          %s168 = sshll.u32 [#allocation8], 4
          %s169 = int_to_ptr.vmem [resolvable:$true] %s168
          %174 = dma.hbm_to_vmem [thread:$0]  %s167, 9216, %s169, [#allocation7], 64, 64, 4
        $region20: #{tpu_custom_call.1} parent=11 // pred_fallthru
          _
        // Predicated region
        $region21: #{tpu_custom_call.1} parent=11 // pred_check
          %p175 = pneg %p106
        $region22: #{tpu_custom_call.1} parent=11 // pred_check_branch
          %177 = sbr.rel (%p175) target = $region24
        $region23: #{tpu_custom_call.1} parent=11 // pred_region
          _
        $region24: #{tpu_custom_call.1} parent=11 // pred_fallthru
          _
      $region12: #{tpu_custom_call.1} parent=5 // pred_fallthru
        _
      %p178 = scmp.lt.s32.totalorder %s17, 2
      // Predicated region
      $region25: #{tpu_custom_call.1} parent=5 // pred_check
        %p179 = pneg %p178
      $region26: #{tpu_custom_call.1} parent=5 // pred_check_branch
        %181 = sbr.rel (%p179) target = $region28
      $region27: #{tpu_custom_call.1} parent=5 // pred_region
        // Predicated region
        $region29: #{tpu_custom_call.1} parent=27 // pred_check
          %p182 = pneg %p37
        $region30: #{tpu_custom_call.1} parent=27 // pred_check_branch
          %184 = sbr.rel (%p182) target = $region32
        $region31: #{tpu_custom_call.1} parent=27 // pred_region
          %s185 = sand.u32 %s27, 1
          %s186 = scalar_lea.sflag [#allocation4], %s185
          %s187 = sand.u32 %s27, 1
          %s188 = smul.addr %s187, 64
          %s189 = scalar_lea.vmem [#allocation3], %s188
          %191 = vsyncadd %s186, 0
          %s192 = smul.addr %s17, 8
          %s193 = smul.addr %s192, 8
          %s194 = scalar_lea.hbm %s0, %s193
          %s195 = sshll.u32 %s194, 4
          %s196 = int_to_ptr.hbm [resolvable:$true] %s195
          %s197 = sshll.u32 %s189, 4
          %s198 = int_to_ptr.vmem [resolvable:$true] %s197
          %203 = dma.hbm_to_vmem [thread:$0]  %s196, 1024, %s198, %s186, 128, 128, 8
        $region32: #{tpu_custom_call.1} parent=27 // pred_fallthru
          _
      $region28: #{tpu_custom_call.1} parent=5 // pred_fallthru
        _
      %p204 = scmp.le.s32.totalorder 1, %s17
      %p205 = scmp.lt.s32.totalorder %s17, 3
      %p206 = pnand %p204, %p205
      %p207 = pneg %p206
      // Predicated region
      $region33: #{tpu_custom_call.1} parent=5 // pred_check
        _
      $region34: #{tpu_custom_call.1} parent=5 // pred_check_branch
        %209 = sbr.rel (%p206) target = $region36
      $region35: #{tpu_custom_call.1} parent=5 // pred_region
        %s210 = ssub.s32 %s17, 1
        %s211 = sand.u32 %s30, 1
        %s212 = scalar_lea.sflag [#allocation4], %s211
        %s213 = sand.u32 %s30, 1
        %s214 = smul.addr %s213, 64
        %s215 = scalar_lea.vmem [#allocation3], %s214
        // Predicated region
        $region37: #{tpu_custom_call.1} parent=35 // pred_check
          %p216 = pneg %p43
        $region38: #{tpu_custom_call.1} parent=35 // pred_check_branch
          %218 = sbr.rel (%p216) target = $region40
        $region39: #{tpu_custom_call.1} parent=35 // pred_region
          %220 = dma.done %s212, 1024
        $region40: #{tpu_custom_call.1} parent=35 // pred_fallthru
          _
        // Predicated region
        $region41: #{tpu_custom_call.1} parent=35 // pred_check
          %p221 = pneg %p64
        $region42: #{tpu_custom_call.1} parent=35 // pred_check_branch
          %223 = sbr.rel (%p221) target = $region44
        $region43: #{tpu_custom_call.1} parent=35 // pred_region
          %225 = dma.done [#allocation7], 1024
        $region44: #{tpu_custom_call.1} parent=35 // pred_fallthru
          _
        // Predicated region
        $region45: #{tpu_custom_call.1} parent=35 // pred_check
          %p226 = pneg %p85
        $region46: #{tpu_custom_call.1} parent=35 // pred_check_branch
          %228 = sbr.rel (%p226) target = $region48
        $region47: #{tpu_custom_call.1} parent=35 // pred_region
          %230 = dma.done [#allocation7], 9216
        $region48: #{tpu_custom_call.1} parent=35 // pred_fallthru
          _
        %s231 = sand.u32 %s30, 1
        %s232 = scalar_lea.sflag [#allocation4], %s231
        %s233 = sand.u32 %s30, 1
        %s234 = smul.addr %s233, 64
        %s235 = scalar_lea.vmem [#allocation3], %s234
        %p236 = pneg %p43
        %p237 = pneg %p40
        %p238 = pneg %p64
        %p239 = pneg %p61
        %p240 = pneg %p85
        %p241 = pneg %p82
        %p242 = pneg %p106
        %p243 = pneg %p103
        %p244 = pneg %p132
        %p245 = pneg %p129
        %s246 = sand.u32 %s119, 1
        %s247 = scalar_lea.sflag [#allocation5], %s246
        %s248 = sand.u32 %s119, 1
        %s249 = smul.addr %s248, 64
        %s250 = scalar_lea.vmem [#allocation9], %s249
        %v252 = vld [vmem:[%s215] sm:$0xff]
        %v253 = vld [vmem:[%s215 + $0x8] sm:$0xff]
        %v254 = vld [vmem:[%s215 + $0x10] sm:$0xff]
        %v255 = vld [vmem:[%s215 + $0x18] sm:$0xff]
        %v256 = vld [vmem:[%s215 + $0x20] sm:$0xff]
        %v257 = vld [vmem:[%s215 + $0x28] sm:$0xff]
        %v258 = vld [vmem:[%s215 + $0x30] sm:$0xff]
        %v259 = vld [vmem:[%s215 + $0x38] sm:$0xff]
        %v260 = vpack.c.bf16 %v253, %v252
        %v261 = vpack.c.bf16 %v255, %v254
        %v262 = vpack.c.bf16 %v257, %v256
        %v263 = vpack.c.bf16 %v259, %v258
        %v264 = vld [vmem:[#allocation6] sm:$0xf]
        %v265 = vld [vmem:[#allocation6 + $0x4] sm:$0xf]
        %v266 = vld [vmem:[#allocation6 + $0x8] sm:$0xf]
        %v267 = vld [vmem:[#allocation6 + $0xc] sm:$0xf]
        %v268 = vld [vmem:[#allocation6 + $0x10] sm:$0xf]
        %v269 = vld [vmem:[#allocation6 + $0x14] sm:$0xf]
        %v270 = vld [vmem:[#allocation6 + $0x18] sm:$0xf]
        %v271 = vld [vmem:[#allocation6 + $0x1c] sm:$0xf]
        %v272 = vld [vmem:[#allocation6 + $0x20] sm:$0xf]
        %v273 = vld [vmem:[#allocation6 + $0x24] sm:$0xf]
        %v274 = vld [vmem:[#allocation6 + $0x28] sm:$0xf]
        %v275 = vld [vmem:[#allocation6 + $0x2c] sm:$0xf]
        %v276 = vld [vmem:[#allocation6 + $0x30] sm:$0xf]
        %v277 = vld [vmem:[#allocation6 + $0x34] sm:$0xf]
        %v278 = vld [vmem:[#allocation6 + $0x38] sm:$0xf]
        %v279 = vld [vmem:[#allocation6 + $0x3c] sm:$0xf]
        %v280 = vld [vmem:[%s3] sm:$0x1]
        %v281 = vperm.slane %v280, 0
        %v298 = vunpack.c.l.b16 %v264
        %v299 = vunpack.c.l.b16 %v265
        %v300 = vunpack.c.l.b16 %v266
        %v301 = vunpack.c.l.b16 %v267
        %v302 = vunpack.c.l.b16 %v268
        %v303 = vunpack.c.l.b16 %v269
        %v304 = vunpack.c.l.b16 %v270
        %v305 = vunpack.c.l.b16 %v271
        %v306 = vunpack.c.l.b16 %v272
        %v307 = vunpack.c.l.b16 %v273
        %v308 = vunpack.c.l.b16 %v274
        %v309 = vunpack.c.l.b16 %v275
        %v310 = vunpack.c.l.b16 %v276
        %v311 = vunpack.c.l.b16 %v277
        %v312 = vunpack.c.l.b16 %v278
        %v313 = vunpack.c.l.b16 %v279
        %v314 = vpack.c.b16 %v299, %v298
        %v315 = vpack.c.b16 %v301, %v300
        %v316 = vpack.c.b16 %v303, %v302
        %v317 = vpack.c.b16 %v305, %v304
        %v318 = vpack.c.b16 %v307, %v306
        %v319 = vpack.c.b16 %v309, %v308
        %v320 = vpack.c.b16 %v311, %v310
        %v321 = vpack.c.b16 %v313, %v312
        %330 = vmatpush.bf16.msra.mxu0 %v321
        %331 = vmatpush.bf16.msra.mxu0 %v320
        %332 = vmatpush.bf16.msra.mxu0 %v319
        %333 = vmatpush.bf16.msra.mxu0 %v318
        %334 = vmatpush.bf16.msra.mxu0 %v317
        %335 = vmatpush.bf16.msra.mxu0 %v316
        %336 = vmatpush.bf16.msra.mxu0 %v315
        %337 = vmatpush.bf16.msra.mxu0 %v314
        %338 = vmatmul.bf16.gmra.mxu0 %v260
        %v339 = vpop.f32.mrf.mxu0
        %v340 = vadd.f32 %v281, %v339
        %v341 = vpop.f32.mrf.mxu0
        %v342 = vadd.f32 %v281, %v341
        %343 = vmatmul.bf16.gmra.mxu0 %v261
        %v344 = vpop.f32.mrf.mxu0
        %v345 = vadd.f32 %v281, %v344
        %v346 = vpop.f32.mrf.mxu0
        %v347 = vadd.f32 %v281, %v346
        %348 = vmatmul.bf16.gmra.mxu0 %v262
        %v349 = vpop.f32.mrf.mxu0
        %v350 = vadd.f32 %v281, %v349
        %v351 = vpop.f32.mrf.mxu0
        %v352 = vadd.f32 %v281, %v351
        %353 = vmatmul.bf16.gmra.mxu0 %v263
        %v354 = vpop.f32.mrf.mxu0
        %v355 = vadd.f32 %v281, %v354
        %v356 = vpop.f32.mrf.mxu0
        %v357 = vadd.f32 %v281, %v356
        %358 = vdwg.mxu0
        %v359 = vmax.f32 %v340, 0.0
        %v360 = vmax.f32 %v342, 0.0
        %v361 = vmax.f32 %v345, 0.0
        %v362 = vmax.f32 %v347, 0.0
        %v363 = vmax.f32 %v350, 0.0
        %v364 = vmax.f32 %v352, 0.0
        %v365 = vmax.f32 %v355, 0.0
        %v366 = vmax.f32 %v357, 0.0
        %v367 = vadd.f32 %v359, %v252
        %v368 = vadd.f32 %v360, %v253
        %v369 = vadd.f32 %v361, %v254
        %v370 = vadd.f32 %v362, %v255
        %v371 = vadd.f32 %v363, %v256
        %v372 = vadd.f32 %v364, %v257
        %v373 = vadd.f32 %v365, %v258
        %v374 = vadd.f32 %v366, %v259
        %375 = vst [vmem:[#allocation2] sm:$0xf] 0
        %376 = vst [vmem:[#allocation2 + $0x4] sm:$0xf] 0
        %s377 = scalar_lea.vmem [#allocation2], 72
        %378 = vst [vmem:[%s377] sm:$0xf] 0
        %379 = vst [vmem:[%s377 + $0x4] sm:$0xf] 0
        %s380 = scalar_lea.vmem [#allocation2], 8
        %vm381 = vcmask 1040384
        %vm382 = vsmask.f32 256
        %vm383 = vmand %vm381, %vm382
        %v384 = vld [vmem:[%s380] sm:$0x1]
        %v385 = vsel %vm383, 0, %v384
        %386 = vst [vmem:[%s380] sm:$0x1] %v385
        %v387 = vld [vmem:[%s380 + $0x8] sm:$0x1]
        %v388 = vsel %vm383, 0, %v387
        %389 = vst [vmem:[%s380 + $0x8] sm:$0x1] %v388
        %v390 = vld [vmem:[%s380 + $0x10] sm:$0x1]
        %v391 = vsel %vm383, 0, %v390
        %392 = vst [vmem:[%s380 + $0x10] sm:$0x1] %v391
        %v393 = vld [vmem:[%s380 + $0x18] sm:$0x1]
        %v394 = vsel %vm383, 0, %v393
        %395 = vst [vmem:[%s380 + $0x18] sm:$0x1] %v394
        %v396 = vld [vmem:[%s380 + $0x20] sm:$0x1]
        %v397 = vsel %vm383, 0, %v396
        %398 = vst [vmem:[%s380 + $0x20] sm:$0x1] %v397
        %v399 = vld [vmem:[%s380 + $0x28] sm:$0x1]
        %v400 = vsel %vm383, 0, %v399
        %401 = vst [vmem:[%s380 + $0x28] sm:$0x1] %v400
        %v402 = vld [vmem:[%s380 + $0x30] sm:$0x1]
        %v403 = vsel %vm383, 0, %v402
        %404 = vst [vmem:[%s380 + $0x30] sm:$0x1] %v403
        %v405 = vld [vmem:[%s380 + $0x38] sm:$0x1]
        %v406 = vsel %vm383, 0, %v405
        %407 = vst [vmem:[%s380 + $0x38] sm:$0x1] %v406
        %vm408 = vsmask.f32 7938
        %vm409 = vmand %vm381, %vm408
        %v410 = vld [vmem:[%s380 + $0x4] sm:$0x1]
        %v411 = vsel %vm409, 0, %v410
        %412 = vst [vmem:[%s380 + $0x4] sm:$0x1] %v411
        %v413 = vld [vmem:[%s380 + $0xc] sm:$0x1]
        %v414 = vsel %vm409, 0, %v413
        %415 = vst [vmem:[%s380 + $0xc] sm:$0x1] %v414
        %v416 = vld [vmem:[%s380 + $0x14] sm:$0x1]
        %v417 = vsel %vm409, 0, %v416
        %418 = vst [vmem:[%s380 + $0x14] sm:$0x1] %v417
        %v419 = vld [vmem:[%s380 + $0x1c] sm:$0x1]
        %v420 = vsel %vm409, 0, %v419
        %421 = vst [vmem:[%s380 + $0x1c] sm:$0x1] %v420
        %v422 = vld [vmem:[%s380 + $0x24] sm:$0x1]
        %v423 = vsel %vm409, 0, %v422
        %424 = vst [vmem:[%s380 + $0x24] sm:$0x1] %v423
        %v425 = vld [vmem:[%s380 + $0x2c] sm:$0x1]
        %v426 = vsel %vm409, 0, %v425
        %427 = vst [vmem:[%s380 + $0x2c] sm:$0x1] %v426
        %v428 = vld [vmem:[%s380 + $0x34] sm:$0x1]
        %v429 = vsel %vm409, 0, %v428
        %430 = vst [vmem:[%s380 + $0x34] sm:$0x1] %v429
        %v431 = vld [vmem:[%s380 + $0x3c] sm:$0x1]
        %v432 = vsel %vm409, 0, %v431
        %433 = vst [vmem:[%s380 + $0x3c] sm:$0x1] %v432
        %v434 = vpack.c.bf16 %v367, %v367
        %v435 = vpack.c.bf16 %v368, %v368
        %v436 = vpack.c.bf16 %v369, %v369
        %v437 = vpack.c.bf16 %v370, %v370
        %v438 = vpack.c.bf16 %v371, %v371
        %v439 = vpack.c.bf16 %v372, %v372
        %v440 = vpack.c.bf16 %v373, %v373
        %v441 = vpack.c.bf16 %v374, %v374
        %v443 = vshrl.u32 %v434, 16
        %v445 = vrot.slane %v443, 7
        %v446 = vshll.u32 %v434, 16
        %v448 = vor.u32 %v445, %v446
        %v449 = vrot.slane %v445, 4
        %v451 = vshrl.u32 %v435, 16
        %v453 = vrot.slane %v451, 7
        %v454 = vshll.u32 %v435, 16
        %v456 = vor.u32 %v453, %v454
        %v457 = vrot.slane %v453, 4
        %v459 = vshrl.u32 %v436, 16
        %v461 = vrot.slane %v459, 7
        %v462 = vshll.u32 %v436, 16
        %v464 = vor.u32 %v461, %v462
        %v465 = vrot.slane %v461, 4
        %v467 = vshrl.u32 %v437, 16
        %v469 = vrot.slane %v467, 7
        %v470 = vshll.u32 %v437, 16
        %v472 = vor.u32 %v469, %v470
        %v473 = vrot.slane %v469, 4
        %v475 = vshrl.u32 %v438, 16
        %v477 = vrot.slane %v475, 7
        %v478 = vshll.u32 %v438, 16
        %v480 = vor.u32 %v477, %v478
        %v481 = vrot.slane %v477, 4
        %v483 = vshrl.u32 %v439, 16
        %v485 = vrot.slane %v483, 7
        %v486 = vshll.u32 %v439, 16
        %v488 = vor.u32 %v485, %v486
        %v489 = vrot.slane %v485, 4
        %v491 = vshrl.u32 %v440, 16
        %v493 = vrot.slane %v491, 7
        %v494 = vshll.u32 %v440, 16
        %v496 = vor.u32 %v493, %v494
        %v497 = vrot.slane %v493, 4
        %v499 = vshrl.u32 %v441, 16
        %v501 = vrot.slane %v499, 7
        %v502 = vshll.u32 %v441, 16
        %v504 = vor.u32 %v501, %v502
        %v505 = vrot.slane %v501, 4
        %vm522 = vcmask 1043456
        %vm523 = vmand %vm522, %vm408
        %v524 = vld [vmem:[%s380] sm:$0xf]
        %v525 = vsel %vm523, %v448, %v524
        %526 = vst [vmem:[%s380] sm:$0xf] %v525
        %v527 = vld [vmem:[%s380 + $0x4] sm:$0x1]
        %v528 = vsel %vm383, %v449, %v527
        %529 = vst [vmem:[%s380 + $0x4] sm:$0x1] %v528
        %v530 = vld [vmem:[%s380 + $0x8] sm:$0xf]
        %v531 = vsel %vm523, %v456, %v530
        %532 = vst [vmem:[%s380 + $0x8] sm:$0xf] %v531
        %v533 = vld [vmem:[%s380 + $0xc] sm:$0x1]
        %v534 = vsel %vm383, %v457, %v533
        %535 = vst [vmem:[%s380 + $0xc] sm:$0x1] %v534
        %v536 = vld [vmem:[%s380 + $0x10] sm:$0xf]
        %v537 = vsel %vm523, %v464, %v536
        %538 = vst [vmem:[%s380 + $0x10] sm:$0xf] %v537
        %v539 = vld [vmem:[%s380 + $0x14] sm:$0x1]
        %v540 = vsel %vm383, %v465, %v539
        %541 = vst [vmem:[%s380 + $0x14] sm:$0x1] %v540
        %v542 = vld [vmem:[%s380 + $0x18] sm:$0xf]
        %v543 = vsel %vm523, %v472, %v542
        %544 = vst [vmem:[%s380 + $0x18] sm:$0xf] %v543
        %v545 = vld [vmem:[%s380 + $0x1c] sm:$0x1]
        %v546 = vsel %vm383, %v473, %v545
        %547 = vst [vmem:[%s380 + $0x1c] sm:$0x1] %v546
        %v548 = vld [vmem:[%s380 + $0x20] sm:$0xf]
        %v549 = vsel %vm523, %v480, %v548
        %550 = vst [vmem:[%s380 + $0x20] sm:$0xf] %v549
        %v551 = vld [vmem:[%s380 + $0x24] sm:$0x1]
        %v552 = vsel %vm383, %v481, %v551
        %553 = vst [vmem:[%s380 + $0x24] sm:$0x1] %v552
        %v554 = vld [vmem:[%s380 + $0x28] sm:$0xf]
        %v555 = vsel %vm523, %v488, %v554
        %556 = vst [vmem:[%s380 + $0x28] sm:$0xf] %v555
        %v557 = vld [vmem:[%s380 + $0x2c] sm:$0x1]
        %v558 = vsel %vm383, %v489, %v557
        %559 = vst [vmem:[%s380 + $0x2c] sm:$0x1] %v558
        %v560 = vld [vmem:[%s380 + $0x30] sm:$0xf]
        %v561 = vsel %vm523, %v496, %v560
        %562 = vst [vmem:[%s380 + $0x30] sm:$0xf] %v561
        %v563 = vld [vmem:[%s380 + $0x34] sm:$0x1]
        %v564 = vsel %vm383, %v497, %v563
        %565 = vst [vmem:[%s380 + $0x34] sm:$0x1] %v564
        %v566 = vld [vmem:[%s380 + $0x38] sm:$0xf]
        %v567 = vsel %vm523, %v504, %v566
        %568 = vst [vmem:[%s380 + $0x38] sm:$0xf] %v567
        %v569 = vld [vmem:[%s380 + $0x3c] sm:$0x1]
        %v570 = vsel %vm383, %v505, %v569
        %571 = vst [vmem:[%s380 + $0x3c] sm:$0x1] %v570
        %v572 = vld [vmem:[#allocation2] sm:$0xf]
        %v573 = vld [vmem:[#allocation2 + $0x8] sm:$0xf]
        %v574 = vld [vmem:[#allocation2 + $0x10] sm:$0xf]
        %v575 = vld [vmem:[#allocation2 + $0x18] sm:$0xf]
        %v576 = vld [vmem:[#allocation2 + $0x20] sm:$0xf]
        %v577 = vld [vmem:[#allocation2 + $0x28] sm:$0xf]
        %v578 = vld [vmem:[#allocation2 + $0x30] sm:$0xf]
        %v579 = vld [vmem:[#allocation2 + $0x38] sm:$0xf]
        %v580 = vld [vmem:[#allocation8] sm:$0xf]
        %v581 = vld [vmem:[#allocation8 + $0x4] sm:$0xf]
        %v582 = vld [vmem:[#allocation8 + $0x8] sm:$0xf]
        %v583 = vld [vmem:[#allocation8 + $0xc] sm:$0xf]
        %v584 = vld [vmem:[#allocation8 + $0x10] sm:$0xf]
        %v585 = vld [vmem:[#allocation8 + $0x14] sm:$0xf]
        %v586 = vld [vmem:[#allocation8 + $0x18] sm:$0xf]
        %v587 = vld [vmem:[#allocation8 + $0x1c] sm:$0xf]
        %v588 = vld [vmem:[#allocation8 + $0x20] sm:$0xf]
        %v589 = vld [vmem:[#allocation8 + $0x24] sm:$0xf]
        %v590 = vld [vmem:[#allocation8 + $0x28] sm:$0xf]
        %v591 = vld [vmem:[#allocation8 + $0x2c] sm:$0xf]
        %v592 = vld [vmem:[#allocation8 + $0x30] sm:$0xf]
        %v593 = vld [vmem:[#allocation8 + $0x34] sm:$0xf]
        %v594 = vld [vmem:[#allocation8 + $0x38] sm:$0xf]
        %v595 = vld [vmem:[#allocation8 + $0x3c] sm:$0xf]
        %v596 = vld [vmem:[#allocation2 + $0x4] sm:$0x1]
        %v597 = vld [vmem:[#allocation2 + $0xc] sm:$0x1]
        %v598 = vld [vmem:[#allocation2 + $0x14] sm:$0x1]
        %v599 = vld [vmem:[#allocation2 + $0x1c] sm:$0x1]
        %v600 = vld [vmem:[#allocation2 + $0x24] sm:$0x1]
        %v601 = vld [vmem:[#allocation2 + $0x2c] sm:$0x1]
        %v602 = vld [vmem:[#allocation2 + $0x34] sm:$0x1]
        %v603 = vld [vmem:[#allocation2 + $0x3c] sm:$0x1]
        %vm604 = vsmask.f32 3328
        %vm605 = vsmask.f32 7440
        %vm606 = vmor %vm604, %vm605
        %v608 = vshrl.u32 %v572, 16
        %v610 = vrot.slane %v608, 4
        %v611 = vshll.u32 %v572, 16
        %v613 = vrot.slane %v611, 5
        %v614 = vor.u32 %v610, %v613
        %v615 = vrot.slane %v614, 4
        %v617 = vshll.u32 %v596, 16
        %v619 = vrot.slane %v617, 5
        %v620 = vsel %vm606, %v615, %v619
        %v622 = vshrl.u32 %v573, 16
        %v624 = vrot.slane %v622, 4
        %v625 = vshll.u32 %v573, 16
        %v627 = vrot.slane %v625, 5
        %v628 = vor.u32 %v624, %v627
        %v629 = vrot.slane %v628, 4
        %v631 = vshll.u32 %v597, 16
        %v633 = vrot.slane %v631, 5
        %v634 = vsel %vm606, %v629, %v633
        %v636 = vshrl.u32 %v574, 16
        %v638 = vrot.slane %v636, 4
        %v639 = vshll.u32 %v574, 16
        %v641 = vrot.slane %v639, 5
        %v642 = vor.u32 %v638, %v641
        %v643 = vrot.slane %v642, 4
        %v645 = vshll.u32 %v598, 16
        %v647 = vrot.slane %v645, 5
        %v648 = vsel %vm606, %v643, %v647
        %v650 = vshrl.u32 %v575, 16
        %v652 = vrot.slane %v650, 4
        %v653 = vshll.u32 %v575, 16
        %v655 = vrot.slane %v653, 5
        %v656 = vor.u32 %v652, %v655
        %v657 = vrot.slane %v656, 4
        %v659 = vshll.u32 %v599, 16
        %v661 = vrot.slane %v659, 5
        %v662 = vsel %vm606, %v657, %v661
        %v664 = vshrl.u32 %v576, 16
        %v666 = vrot.slane %v664, 4
        %v667 = vshll.u32 %v576, 16
        %v669 = vrot.slane %v667, 5
        %v670 = vor.u32 %v666, %v669
        %v671 = vrot.slane %v670, 4
        %v673 = vshll.u32 %v600, 16
        %v675 = vrot.slane %v673, 5
        %v676 = vsel %vm606, %v671, %v675
        %v678 = vshrl.u32 %v577, 16
        %v680 = vrot.slane %v678, 4
        %v681 = vshll.u32 %v577, 16
        %v683 = vrot.slane %v681, 5
        %v684 = vor.u32 %v680, %v683
        %v685 = vrot.slane %v684, 4
        %v687 = vshll.u32 %v601, 16
        %v689 = vrot.slane %v687, 5
        %v690 = vsel %vm606, %v685, %v689
        %v692 = vshrl.u32 %v578, 16
        %v694 = vrot.slane %v692, 4
        %v695 = vshll.u32 %v578, 16
        %v697 = vrot.slane %v695, 5
        %v698 = vor.u32 %v694, %v697
        %v699 = vrot.slane %v698, 4
        %v701 = vshll.u32 %v602, 16
        %v703 = vrot.slane %v701, 5
        %v704 = vsel %vm606, %v699, %v703
        %v706 = vshrl.u32 %v579, 16
        %v708 = vrot.slane %v706, 4
        %v709 = vshll.u32 %v579, 16
        %v711 = vrot.slane %v709, 5
        %v712 = vor.u32 %v708, %v711
        %v713 = vrot.slane %v712, 4
        %v715 = vshll.u32 %v603, 16
        %v717 = vrot.slane %v715, 5
        %v718 = vsel %vm606, %v713, %v717
        %v719 = vld [vmem:[#allocation8 + $0x40] sm:$0xf]
        %v720 = vld [vmem:[#allocation8 + $0x44] sm:$0xf]
        %v721 = vld [vmem:[#allocation8 + $0x48] sm:$0xf]
        %v722 = vld [vmem:[#allocation8 + $0x4c] sm:$0xf]
        %v723 = vld [vmem:[#allocation8 + $0x50] sm:$0xf]
        %v724 = vld [vmem:[#allocation8 + $0x54] sm:$0xf]
        %v725 = vld [vmem:[#allocation8 + $0x58] sm:$0xf]
        %v726 = vld [vmem:[#allocation8 + $0x5c] sm:$0xf]
        %v727 = vld [vmem:[#allocation8 + $0x60] sm:$0xf]
        %v728 = vld [vmem:[#allocation8 + $0x64] sm:$0xf]
        %v729 = vld [vmem:[#allocation8 + $0x68] sm:$0xf]
        %v730 = vld [vmem:[#allocation8 + $0x6c] sm:$0xf]
        %v731 = vld [vmem:[#allocation8 + $0x70] sm:$0xf]
        %v732 = vld [vmem:[#allocation8 + $0x74] sm:$0xf]
        %v733 = vld [vmem:[#allocation8 + $0x78] sm:$0xf]
        %v734 = vld [vmem:[#allocation8 + $0x7c] sm:$0xf]
        %v735 = vunpack.c.l.b16 %v620
        %v736 = vunpack.c.l.b16 %v634
        %v737 = vunpack.c.l.b16 %v648
        %v738 = vunpack.c.l.b16 %v662
        %v739 = vunpack.c.l.b16 %v676
        %v740 = vunpack.c.l.b16 %v690
        %v741 = vunpack.c.l.b16 %v704
        %v742 = vunpack.c.l.b16 %v718
        %v743 = vpack.c.b16 %v736, %v735
        %v744 = vpack.c.b16 %v738, %v737
        %v745 = vpack.c.b16 %v740, %v739
        %v746 = vpack.c.b16 %v742, %v741
        %v767 = vunpack.c.l.b16 %v719
        %v768 = vunpack.c.l.b16 %v720
        %v769 = vunpack.c.l.b16 %v721
        %v770 = vunpack.c.l.b16 %v722
        %v771 = vunpack.c.l.b16 %v723
        %v772 = vunpack.c.l.b16 %v724
        %v773 = vunpack.c.l.b16 %v725
        %v774 = vunpack.c.l.b16 %v726
        %v775 = vunpack.c.l.b16 %v727
        %v776 = vunpack.c.l.b16 %v728
        %v777 = vunpack.c.l.b16 %v729
        %v778 = vunpack.c.l.b16 %v730
        %v779 = vunpack.c.l.b16 %v731
        %v780 = vunpack.c.l.b16 %v732
        %v781 = vunpack.c.l.b16 %v733
        %v782 = vunpack.c.l.b16 %v734
        %v783 = vpack.c.b16 %v768, %v767
        %v784 = vpack.c.b16 %v770, %v769
        %v785 = vpack.c.b16 %v772, %v771
        %v786 = vpack.c.b16 %v774, %v773
        %v787 = vpack.c.b16 %v776, %v775
        %v788 = vpack.c.b16 %v778, %v777
        %v789 = vpack.c.b16 %v780, %v779
        %v790 = vpack.c.b16 %v782, %v781
        %799 = vmatpush.bf16.msra.mxu0 %v790
        %800 = vmatpush.bf16.msra.mxu0 %v789
        %801 = vmatpush.bf16.msra.mxu0 %v788
        %802 = vmatpush.bf16.msra.mxu0 %v787
        %803 = vmatpush.bf16.msra.mxu0 %v786
        %804 = vmatpush.bf16.msra.mxu0 %v785
        %805 = vmatpush.bf16.msra.mxu0 %v784
        %806 = vmatpush.bf16.msra.mxu0 %v783
        %807 = vmatmul.bf16.gmra.mxu0 %v743
        %v808 = vpop.f32.mrf.mxu0
        %v809 = vadd.f32 0.0, %v808
        %v810 = vpop.f32.mrf.mxu0
        %v811 = vadd.f32 0.0, %v810
        %812 = vmatmul.bf16.gmra.mxu0 %v744
        %v813 = vpop.f32.mrf.mxu0
        %v814 = vadd.f32 0.0, %v813
        %v815 = vpop.f32.mrf.mxu0
        %v816 = vadd.f32 0.0, %v815
        %817 = vmatmul.bf16.gmra.mxu0 %v745
        %v818 = vpop.f32.mrf.mxu0
        %v819 = vadd.f32 0.0, %v818
        %v820 = vpop.f32.mrf.mxu0
        %v821 = vadd.f32 0.0, %v820
        %822 = vmatmul.bf16.gmra.mxu0 %v746
        %v823 = vpop.f32.mrf.mxu0
        %v824 = vadd.f32 0.0, %v823
        %v825 = vpop.f32.mrf.mxu0
        %v826 = vadd.f32 0.0, %v825
        %827 = vdwg.mxu0
        %v836 = vunpack.c.l.b16 %v572
        %v837 = vunpack.c.l.b16 %v573
        %v838 = vunpack.c.l.b16 %v574
        %v839 = vunpack.c.l.b16 %v575
        %v840 = vunpack.c.l.b16 %v576
        %v841 = vunpack.c.l.b16 %v577
        %v842 = vunpack.c.l.b16 %v578
        %v843 = vunpack.c.l.b16 %v579
        %v844 = vpack.c.b16 %v837, %v836
        %v845 = vpack.c.b16 %v839, %v838
        %v846 = vpack.c.b16 %v841, %v840
        %v847 = vpack.c.b16 %v843, %v842
        %v868 = vunpack.c.l.b16 %v580
        %v869 = vunpack.c.l.b16 %v581
        %v870 = vunpack.c.l.b16 %v582
        %v871 = vunpack.c.l.b16 %v583
        %v872 = vunpack.c.l.b16 %v584
        %v873 = vunpack.c.l.b16 %v585
        %v874 = vunpack.c.l.b16 %v586
        %v875 = vunpack.c.l.b16 %v587
        %v876 = vunpack.c.l.b16 %v588
        %v877 = vunpack.c.l.b16 %v589
        %v878 = vunpack.c.l.b16 %v590
        %v879 = vunpack.c.l.b16 %v591
        %v880 = vunpack.c.l.b16 %v592
        %v881 = vunpack.c.l.b16 %v593
        %v882 = vunpack.c.l.b16 %v594
        %v883 = vunpack.c.l.b16 %v595
        %v884 = vpack.c.b16 %v869, %v868
        %v885 = vpack.c.b16 %v871, %v870
        %v886 = vpack.c.b16 %v873, %v872
        %v887 = vpack.c.b16 %v875, %v874
        %v888 = vpack.c.b16 %v877, %v876
        %v889 = vpack.c.b16 %v879, %v878
        %v890 = vpack.c.b16 %v881, %v880
        %v891 = vpack.c.b16 %v883, %v882
        %900 = vmatpush.bf16.msra.mxu0 %v891
        %901 = vmatpush.bf16.msra.mxu0 %v890
        %902 = vmatpush.bf16.msra.mxu0 %v889
        %903 = vmatpush.bf16.msra.mxu0 %v888
        %904 = vmatpush.bf16.msra.mxu0 %v887
        %905 = vmatpush.bf16.msra.mxu0 %v886
        %906 = vmatpush.bf16.msra.mxu0 %v885
        %907 = vmatpush.bf16.msra.mxu0 %v884
        %908 = vmatmul.bf16.gmra.mxu0 %v844
        %v909 = vpop.f32.mrf.mxu0
        %v910 = vadd.f32 %v809, %v909
        %v911 = vpop.f32.mrf.mxu0
        %v912 = vadd.f32 %v811, %v911
        %913 = vmatmul.bf16.gmra.mxu0 %v845
        %v914 = vpop.f32.mrf.mxu0
        %v915 = vadd.f32 %v814, %v914
        %v916 = vpop.f32.mrf.mxu0
        %v917 = vadd.f32 %v816, %v916
        %918 = vmatmul.bf16.gmra.mxu0 %v846
        %v919 = vpop.f32.mrf.mxu0
        %v920 = vadd.f32 %v819, %v919
        %v921 = vpop.f32.mrf.mxu0
        %v922 = vadd.f32 %v821, %v921
        %923 = vmatmul.bf16.gmra.mxu0 %v847
        %v924 = vpop.f32.mrf.mxu0
        %v925 = vadd.f32 %v824, %v924
        %v926 = vpop.f32.mrf.mxu0
        %v927 = vadd.f32 %v826, %v926
        %928 = vdwg.mxu0
        %v929 = vld [vmem:[#allocation2] sm:$0xe]
        %v930 = vld [vmem:[#allocation2 + $0x8] sm:$0xe]
        %v931 = vld [vmem:[#allocation2 + $0x10] sm:$0xe]
        %v932 = vld [vmem:[#allocation2 + $0x18] sm:$0xe]
        %v933 = vld [vmem:[#allocation2 + $0x20] sm:$0xe]
        %v934 = vld [vmem:[#allocation2 + $0x28] sm:$0xe]
        %v935 = vld [vmem:[#allocation2 + $0x30] sm:$0xe]
        %v936 = vld [vmem:[#allocation2 + $0x38] sm:$0xe]
        %vm953 = vcmask 1042432
        %vm954 = vcmask 1046532
        %vm955 = vmor %vm953, %vm954
        %v956 = vrot.slane %v929, 5
        %v957 = vrot.slane %v956, 4
        %v958 = vrot.slane %v596, 5
        %v959 = vsel %vm955, %v957, %v958
        %v960 = vrot.slane %v930, 5
        %v961 = vrot.slane %v960, 4
        %v962 = vrot.slane %v597, 5
        %v963 = vsel %vm955, %v961, %v962
        %v964 = vrot.slane %v931, 5
        %v965 = vrot.slane %v964, 4
        %v966 = vrot.slane %v598, 5
        %v967 = vsel %vm955, %v965, %v966
        %v968 = vrot.slane %v932, 5
        %v969 = vrot.slane %v968, 4
        %v970 = vrot.slane %v599, 5
        %v971 = vsel %vm955, %v969, %v970
        %v972 = vrot.slane %v933, 5
        %v973 = vrot.slane %v972, 4
        %v974 = vrot.slane %v600, 5
        %v975 = vsel %vm955, %v973, %v974
        %v976 = vrot.slane %v934, 5
        %v977 = vrot.slane %v976, 4
        %v978 = vrot.slane %v601, 5
        %v979 = vsel %vm955, %v977, %v978
        %v980 = vrot.slane %v935, 5
        %v981 = vrot.slane %v980, 4
        %v982 = vrot.slane %v602, 5
        %v983 = vsel %vm955, %v981, %v982
        %v984 = vrot.slane %v936, 5
        %v985 = vrot.slane %v984, 4
        %v986 = vrot.slane %v603, 5
        %v987 = vsel %vm955, %v985, %v986
        %v988 = vld [vmem:[#allocation8 + $0x80] sm:$0xf]
        %v989 = vld [vmem:[#allocation8 + $0x84] sm:$0xf]
        %v990 = vld [vmem:[#allocation8 + $0x88] sm:$0xf]
        %v991 = vld [vmem:[#allocation8 + $0x8c] sm:$0xf]
        %v992 = vld [vmem:[#allocation8 + $0x90] sm:$0xf]
        %v993 = vld [vmem:[#allocation8 + $0x94] sm:$0xf]
        %v994 = vld [vmem:[#allocation8 + $0x98] sm:$0xf]
        %v995 = vld [vmem:[#allocation8 + $0x9c] sm:$0xf]
        %v996 = vld [vmem:[#allocation8 + $0xa0] sm:$0xf]
        %v997 = vld [vmem:[#allocation8 + $0xa4] sm:$0xf]
        %v998 = vld [vmem:[#allocation8 + $0xa8] sm:$0xf]
        %v999 = vld [vmem:[#allocation8 + $0xac] sm:$0xf]
        %v1000 = vld [vmem:[#allocation8 + $0xb0] sm:$0xf]
        %v1001 = vld [vmem:[#allocation8 + $0xb4] sm:$0xf]
        %v1002 = vld [vmem:[#allocation8 + $0xb8] sm:$0xf]
        %v1003 = vld [vmem:[#allocation8 + $0xbc] sm:$0xf]
        %v1004 = vunpack.c.l.b16 %v959
        %v1005 = vunpack.c.l.b16 %v963
        %v1006 = vunpack.c.l.b16 %v967
        %v1007 = vunpack.c.l.b16 %v971
        %v1008 = vunpack.c.l.b16 %v975
        %v1009 = vunpack.c.l.b16 %v979
        %v1010 = vunpack.c.l.b16 %v983
        %v1011 = vunpack.c.l.b16 %v987
        %v1012 = vpack.c.b16 %v1005, %v1004
        %v1013 = vpack.c.b16 %v1007, %v1006
        %v1014 = vpack.c.b16 %v1009, %v1008
        %v1015 = vpack.c.b16 %v1011, %v1010
        %v1036 = vunpack.c.l.b16 %v988
        %v1037 = vunpack.c.l.b16 %v989
        %v1038 = vunpack.c.l.b16 %v990
        %v1039 = vunpack.c.l.b16 %v991
        %v1040 = vunpack.c.l.b16 %v992
        %v1041 = vunpack.c.l.b16 %v993
        %v1042 = vunpack.c.l.b16 %v994
        %v1043 = vunpack.c.l.b16 %v995
        %v1044 = vunpack.c.l.b16 %v996
        %v1045 = vunpack.c.l.b16 %v997
        %v1046 = vunpack.c.l.b16 %v998
        %v1047 = vunpack.c.l.b16 %v999
        %v1048 = vunpack.c.l.b16 %v1000
        %v1049 = vunpack.c.l.b16 %v1001
        %v1050 = vunpack.c.l.b16 %v1002
        %v1051 = vunpack.c.l.b16 %v1003
        %v1052 = vpack.c.b16 %v1037, %v1036
        %v1053 = vpack.c.b16 %v1039, %v1038
        %v1054 = vpack.c.b16 %v1041, %v1040
        %v1055 = vpack.c.b16 %v1043, %v1042
        %v1056 = vpack.c.b16 %v1045, %v1044
        %v1057 = vpack.c.b16 %v1047, %v1046
        %v1058 = vpack.c.b16 %v1049, %v1048
        %v1059 = vpack.c.b16 %v1051, %v1050
        %1068 = vmatpush.bf16.msra.mxu0 %v1059
        %1069 = vmatpush.bf16.msra.mxu0 %v1058
        %1070 = vmatpush.bf16.msra.mxu0 %v1057
        %1071 = vmatpush.bf16.msra.mxu0 %v1056
        %1072 = vmatpush.bf16.msra.mxu0 %v1055
        %1073 = vmatpush.bf16.msra.mxu0 %v1054
        %1074 = vmatpush.bf16.msra.mxu0 %v1053
        %1075 = vmatpush.bf16.msra.mxu0 %v1052
        %1076 = vmatmul.bf16.gmra.mxu0 %v1012
        %v1077 = vpop.f32.mrf.mxu0
        %v1078 = vadd.f32 0.0, %v1077
        %v1079 = vpop.f32.mrf.mxu0
        %v1080 = vadd.f32 0.0, %v1079
        %1081 = vmatmul.bf16.gmra.mxu0 %v1013
        %v1082 = vpop.f32.mrf.mxu0
        %v1083 = vadd.f32 0.0, %v1082
        %v1084 = vpop.f32.mrf.mxu0
        %v1085 = vadd.f32 0.0, %v1084
        %1086 = vmatmul.bf16.gmra.mxu0 %v1014
        %v1087 = vpop.f32.mrf.mxu0
        %v1088 = vadd.f32 0.0, %v1087
        %v1089 = vpop.f32.mrf.mxu0
        %v1090 = vadd.f32 0.0, %v1089
        %1091 = vmatmul.bf16.gmra.mxu0 %v1015
        %v1092 = vpop.f32.mrf.mxu0
        %v1093 = vadd.f32 0.0, %v1092
        %v1094 = vpop.f32.mrf.mxu0
        %v1095 = vadd.f32 0.0, %v1094
        %1096 = vdwg.mxu0
        %v1097 = vadd.f32 %v910, %v1078
        %v1098 = vadd.f32 %v912, %v1080
        %v1099 = vadd.f32 %v915, %v1083
        %v1100 = vadd.f32 %v917, %v1085
        %v1101 = vadd.f32 %v920, %v1088
        %v1102 = vadd.f32 %v922, %v1090
        %v1103 = vadd.f32 %v925, %v1093
        %v1104 = vadd.f32 %v927, %v1095
        %v1105 = vld [vmem:[%s380] sm:$0xf]
        %v1106 = vld [vmem:[%s380 + $0x8] sm:$0xf]
        %v1107 = vld [vmem:[%s380 + $0x10] sm:$0xf]
        %v1108 = vld [vmem:[%s380 + $0x18] sm:$0xf]
        %v1109 = vld [vmem:[%s380 + $0x20] sm:$0xf]
        %v1110 = vld [vmem:[%s380 + $0x28] sm:$0xf]
        %v1111 = vld [vmem:[%s380 + $0x30] sm:$0xf]
        %v1112 = vld [vmem:[%s380 + $0x38] sm:$0xf]
        %v1113 = vld [vmem:[#allocation8 + $0xc0] sm:$0xf]
        %v1114 = vld [vmem:[#allocation8 + $0xc4] sm:$0xf]
        %v1115 = vld [vmem:[#allocation8 + $0xc8] sm:$0xf]
        %v1116 = vld [vmem:[#allocation8 + $0xcc] sm:$0xf]
        %v1117 = vld [vmem:[#allocation8 + $0xd0] sm:$0xf]
        %v1118 = vld [vmem:[#allocation8 + $0xd4] sm:$0xf]
        %v1119 = vld [vmem:[#allocation8 + $0xd8] sm:$0xf]
        %v1120 = vld [vmem:[#allocation8 + $0xdc] sm:$0xf]
        %v1121 = vld [vmem:[#allocation8 + $0xe0] sm:$0xf]
        %v1122 = vld [vmem:[#allocation8 + $0xe4] sm:$0xf]
        %v1123 = vld [vmem:[#allocation8 + $0xe8] sm:$0xf]
        %v1124 = vld [vmem:[#allocation8 + $0xec] sm:$0xf]
        %v1125 = vld [vmem:[#allocation8 + $0xf0] sm:$0xf]
        %v1126 = vld [vmem:[#allocation8 + $0xf4] sm:$0xf]
        %v1127 = vld [vmem:[#allocation8 + $0xf8] sm:$0xf]
        %v1128 = vld [vmem:[#allocation8 + $0xfc] sm:$0xf]
        %v1137 = vunpack.c.l.b16 %v1105
        %v1138 = vunpack.c.l.b16 %v1106
        %v1139 = vunpack.c.l.b16 %v1107
        %v1140 = vunpack.c.l.b16 %v1108
        %v1141 = vunpack.c.l.b16 %v1109
        %v1142 = vunpack.c.l.b16 %v1110
        %v1143 = vunpack.c.l.b16 %v1111
        %v1144 = vunpack.c.l.b16 %v1112
        %v1145 = vpack.c.b16 %v1138, %v1137
        %v1146 = vpack.c.b16 %v1140, %v1139
        %v1147 = vpack.c.b16 %v1142, %v1141
        %v1148 = vpack.c.b16 %v1144, %v1143
        %v1169 = vunpack.c.l.b16 %v1113
        %v1170 = vunpack.c.l.b16 %v1114
        %v1171 = vunpack.c.l.b16 %v1115
        %v1172 = vunpack.c.l.b16 %v1116
        %v1173 = vunpack.c.l.b16 %v1117
        %v1174 = vunpack.c.l.b16 %v1118
        %v1175 = vunpack.c.l.b16 %v1119
        %v1176 = vunpack.c.l.b16 %v1120
        %v1177 = vunpack.c.l.b16 %v1121
        %v1178 = vunpack.c.l.b16 %v1122
        %v1179 = vunpack.c.l.b16 %v1123
        %v1180 = vunpack.c.l.b16 %v1124
        %v1181 = vunpack.c.l.b16 %v1125
        %v1182 = vunpack.c.l.b16 %v1126
        %v1183 = vunpack.c.l.b16 %v1127
        %v1184 = vunpack.c.l.b16 %v1128
        %v1185 = vpack.c.b16 %v1170, %v1169
        %v1186 = vpack.c.b16 %v1172, %v1171
        %v1187 = vpack.c.b16 %v1174, %v1173
        %v1188 = vpack.c.b16 %v1176, %v1175
        %v1189 = vpack.c.b16 %v1178, %v1177
        %v1190 = vpack.c.b16 %v1180, %v1179
        %v1191 = vpack.c.b16 %v1182, %v1181
        %v1192 = vpack.c.b16 %v1184, %v1183
        %1201 = vmatpush.bf16.msra.mxu0 %v1192
        %1202 = vmatpush.bf16.msra.mxu0 %v1191
        %1203 = vmatpush.bf16.msra.mxu0 %v1190
        %1204 = vmatpush.bf16.msra.mxu0 %v1189
        %1205 = vmatpush.bf16.msra.mxu0 %v1188
        %1206 = vmatpush.bf16.msra.mxu0 %v1187
        %1207 = vmatpush.bf16.msra.mxu0 %v1186
        %1208 = vmatpush.bf16.msra.mxu0 %v1185
        %1209 = vmatmul.bf16.gmra.mxu0 %v1145
        %v1210 = vpop.f32.mrf.mxu0
        %v1211 = vadd.f32 0.0, %v1210
        %v1212 = vpop.f32.mrf.mxu0
        %v1213 = vadd.f32 0.0, %v1212
        %1214 = vmatmul.bf16.gmra.mxu0 %v1146
        %v1215 = vpop.f32.mrf.mxu0
        %v1216 = vadd.f32 0.0, %v1215
        %v1217 = vpop.f32.mrf.mxu0
        %v1218 = vadd.f32 0.0, %v1217
        %1219 = vmatmul.bf16.gmra.mxu0 %v1147
        %v1220 = vpop.f32.mrf.mxu0
        %v1221 = vadd.f32 0.0, %v1220
        %v1222 = vpop.f32.mrf.mxu0
        %v1223 = vadd.f32 0.0, %v1222
        %1224 = vmatmul.bf16.gmra.mxu0 %v1148
        %v1225 = vpop.f32.mrf.mxu0
        %v1226 = vadd.f32 0.0, %v1225
        %v1227 = vpop.f32.mrf.mxu0
        %v1228 = vadd.f32 0.0, %v1227
        %1229 = vdwg.mxu0
        %v1230 = vadd.f32 %v1097, %v1211
        %v1231 = vadd.f32 %v1098, %v1213
        %v1232 = vadd.f32 %v1099, %v1216
        %v1233 = vadd.f32 %v1100, %v1218
        %v1234 = vadd.f32 %v1101, %v1221
        %v1235 = vadd.f32 %v1102, %v1223
        %v1236 = vadd.f32 %v1103, %v1226
        %v1237 = vadd.f32 %v1104, %v1228
        %v1238 = vld [vmem:[%s380] sm:$0xf]
        %v1239 = vld [vmem:[%s380 + $0x4] sm:$0x1]
        %v1240 = vld [vmem:[%s380 + $0x8] sm:$0xf]
        %v1241 = vld [vmem:[%s380 + $0xc] sm:$0x1]
        %v1242 = vld [vmem:[%s380 + $0x10] sm:$0xf]
        %v1243 = vld [vmem:[%s380 + $0x14] sm:$0x1]
        %v1244 = vld [vmem:[%s380 + $0x18] sm:$0xf]
        %v1245 = vld [vmem:[%s380 + $0x1c] sm:$0x1]
        %v1246 = vld [vmem:[%s380 + $0x20] sm:$0xf]
        %v1247 = vld [vmem:[%s380 + $0x24] sm:$0x1]
        %v1248 = vld [vmem:[%s380 + $0x28] sm:$0xf]
        %v1249 = vld [vmem:[%s380 + $0x2c] sm:$0x1]
        %v1250 = vld [vmem:[%s380 + $0x30] sm:$0xf]
        %v1251 = vld [vmem:[%s380 + $0x34] sm:$0x1]
        %v1252 = vld [vmem:[%s380 + $0x38] sm:$0xf]
        %v1253 = vld [vmem:[%s380 + $0x3c] sm:$0x1]
        %v1255 = vshrl.u32 %v1238, 16
        %v1257 = vrot.slane %v1255, 4
        %v1258 = vshll.u32 %v1238, 16
        %v1260 = vrot.slane %v1258, 5
        %v1261 = vor.u32 %v1257, %v1260
        %v1262 = vrot.slane %v1261, 4
        %v1264 = vshll.u32 %v1239, 16
        %v1266 = vrot.slane %v1264, 5
        %v1267 = vsel %vm606, %v1262, %v1266
        %v1269 = vshrl.u32 %v1240, 16
        %v1271 = vrot.slane %v1269, 4
        %v1272 = vshll.u32 %v1240, 16
        %v1274 = vrot.slane %v1272, 5
        %v1275 = vor.u32 %v1271, %v1274
        %v1276 = vrot.slane %v1275, 4
        %v1278 = vshll.u32 %v1241, 16
        %v1280 = vrot.slane %v1278, 5
        %v1281 = vsel %vm606, %v1276, %v1280
        %v1283 = vshrl.u32 %v1242, 16
        %v1285 = vrot.slane %v1283, 4
        %v1286 = vshll.u32 %v1242, 16
        %v1288 = vrot.slane %v1286, 5
        %v1289 = vor.u32 %v1285, %v1288
        %v1290 = vrot.slane %v1289, 4
        %v1292 = vshll.u32 %v1243, 16
        %v1294 = vrot.slane %v1292, 5
        %v1295 = vsel %vm606, %v1290, %v1294
        %v1297 = vshrl.u32 %v1244, 16
        %v1299 = vrot.slane %v1297, 4
        %v1300 = vshll.u32 %v1244, 16
        %v1302 = vrot.slane %v1300, 5
        %v1303 = vor.u32 %v1299, %v1302
        %v1304 = vrot.slane %v1303, 4
        %v1306 = vshll.u32 %v1245, 16
        %v1308 = vrot.slane %v1306, 5
        %v1309 = vsel %vm606, %v1304, %v1308
        %v1311 = vshrl.u32 %v1246, 16
        %v1313 = vrot.slane %v1311, 4
        %v1314 = vshll.u32 %v1246, 16
        %v1316 = vrot.slane %v1314, 5
        %v1317 = vor.u32 %v1313, %v1316
        %v1318 = vrot.slane %v1317, 4
        %v1320 = vshll.u32 %v1247, 16
        %v1322 = vrot.slane %v1320, 5
        %v1323 = vsel %vm606, %v1318, %v1322
        %v1325 = vshrl.u32 %v1248, 16
        %v1327 = vrot.slane %v1325, 4
        %v1328 = vshll.u32 %v1248, 16
        %v1330 = vrot.slane %v1328, 5
        %v1331 = vor.u32 %v1327, %v1330
        %v1332 = vrot.slane %v1331, 4
        %v1334 = vshll.u32 %v1249, 16
        %v1336 = vrot.slane %v1334, 5
        %v1337 = vsel %vm606, %v1332, %v1336
        %v1339 = vshrl.u32 %v1250, 16
        %v1341 = vrot.slane %v1339, 4
        %v1342 = vshll.u32 %v1250, 16
        %v1344 = vrot.slane %v1342, 5
        %v1345 = vor.u32 %v1341, %v1344
        %v1346 = vrot.slane %v1345, 4
        %v1348 = vshll.u32 %v1251, 16
        %v1350 = vrot.slane %v1348, 5
        %v1351 = vsel %vm606, %v1346, %v1350
        %v1353 = vshrl.u32 %v1252, 16
        %v1355 = vrot.slane %v1353, 4
        %v1356 = vshll.u32 %v1252, 16
        %v1358 = vrot.slane %v1356, 5
        %v1359 = vor.u32 %v1355, %v1358
        %v1360 = vrot.slane %v1359, 4
        %v1362 = vshll.u32 %v1253, 16
        %v1364 = vrot.slane %v1362, 5
        %v1365 = vsel %vm606, %v1360, %v1364
        %v1366 = vld [vmem:[#allocation8 + $0x100] sm:$0xf]
        %v1367 = vld [vmem:[#allocation8 + $0x104] sm:$0xf]
        %v1368 = vld [vmem:[#allocation8 + $0x108] sm:$0xf]
        %v1369 = vld [vmem:[#allocation8 + $0x10c] sm:$0xf]
        %v1370 = vld [vmem:[#allocation8 + $0x110] sm:$0xf]
        %v1371 = vld [vmem:[#allocation8 + $0x114] sm:$0xf]
        %v1372 = vld [vmem:[#allocation8 + $0x118] sm:$0xf]
        %v1373 = vld [vmem:[#allocation8 + $0x11c] sm:$0xf]
        %v1374 = vld [vmem:[#allocation8 + $0x120] sm:$0xf]
        %v1375 = vld [vmem:[#allocation8 + $0x124] sm:$0xf]
        %v1376 = vld [vmem:[#allocation8 + $0x128] sm:$0xf]
        %v1377 = vld [vmem:[#allocation8 + $0x12c] sm:$0xf]
        %v1378 = vld [vmem:[#allocation8 + $0x130] sm:$0xf]
        %v1379 = vld [vmem:[#allocation8 + $0x134] sm:$0xf]
        %v1380 = vld [vmem:[#allocation8 + $0x138] sm:$0xf]
        %v1381 = vld [vmem:[#allocation8 + $0x13c] sm:$0xf]
        %v1382 = vunpack.c.l.b16 %v1267
        %v1383 = vunpack.c.l.b16 %v1281
        %v1384 = vunpack.c.l.b16 %v1295
        %v1385 = vunpack.c.l.b16 %v1309
        %v1386 = vunpack.c.l.b16 %v1323
        %v1387 = vunpack.c.l.b16 %v1337
        %v1388 = vunpack.c.l.b16 %v1351
        %v1389 = vunpack.c.l.b16 %v1365
        %v1390 = vpack.c.b16 %v1383, %v1382
        %v1391 = vpack.c.b16 %v1385, %v1384
        %v1392 = vpack.c.b16 %v1387, %v1386
        %v1393 = vpack.c.b16 %v1389, %v1388
        %v1414 = vunpack.c.l.b16 %v1366
        %v1415 = vunpack.c.l.b16 %v1367
        %v1416 = vunpack.c.l.b16 %v1368
        %v1417 = vunpack.c.l.b16 %v1369
        %v1418 = vunpack.c.l.b16 %v1370
        %v1419 = vunpack.c.l.b16 %v1371
        %v1420 = vunpack.c.l.b16 %v1372
        %v1421 = vunpack.c.l.b16 %v1373
        %v1422 = vunpack.c.l.b16 %v1374
        %v1423 = vunpack.c.l.b16 %v1375
        %v1424 = vunpack.c.l.b16 %v1376
        %v1425 = vunpack.c.l.b16 %v1377
        %v1426 = vunpack.c.l.b16 %v1378
        %v1427 = vunpack.c.l.b16 %v1379
        %v1428 = vunpack.c.l.b16 %v1380
        %v1429 = vunpack.c.l.b16 %v1381
        %v1430 = vpack.c.b16 %v1415, %v1414
        %v1431 = vpack.c.b16 %v1417, %v1416
        %v1432 = vpack.c.b16 %v1419, %v1418
        %v1433 = vpack.c.b16 %v1421, %v1420
        %v1434 = vpack.c.b16 %v1423, %v1422
        %v1435 = vpack.c.b16 %v1425, %v1424
        %v1436 = vpack.c.b16 %v1427, %v1426
        %v1437 = vpack.c.b16 %v1429, %v1428
        %1446 = vmatpush.bf16.msra.mxu0 %v1437
        %1447 = vmatpush.bf16.msra.mxu0 %v1436
        %1448 = vmatpush.bf16.msra.mxu0 %v1435
        %1449 = vmatpush.bf16.msra.mxu0 %v1434
        %1450 = vmatpush.bf16.msra.mxu0 %v1433
        %1451 = vmatpush.bf16.msra.mxu0 %v1432
        %1452 = vmatpush.bf16.msra.mxu0 %v1431
        %1453 = vmatpush.bf16.msra.mxu0 %v1430
        %1454 = vmatmul.bf16.gmra.mxu0 %v1390
        %v1455 = vpop.f32.mrf.mxu0
        %v1456 = vadd.f32 0.0, %v1455
        %v1457 = vpop.f32.mrf.mxu0
        %v1458 = vadd.f32 0.0, %v1457
        %1459 = vmatmul.bf16.gmra.mxu0 %v1391
        %v1460 = vpop.f32.mrf.mxu0
        %v1461 = vadd.f32 0.0, %v1460
        %v1462 = vpop.f32.mrf.mxu0
        %v1463 = vadd.f32 0.0, %v1462
        %1464 = vmatmul.bf16.gmra.mxu0 %v1392
        %v1465 = vpop.f32.mrf.mxu0
        %v1466 = vadd.f32 0.0, %v1465
        %v1467 = vpop.f32.mrf.mxu0
        %v1468 = vadd.f32 0.0, %v1467
        %1469 = vmatmul.bf16.gmra.mxu0 %v1393
        %v1470 = vpop.f32.mrf.mxu0
        %v1471 = vadd.f32 0.0, %v1470
        %v1472 = vpop.f32.mrf.mxu0
        %v1473 = vadd.f32 0.0, %v1472
        %1474 = vdwg.mxu0
        %v1475 = vadd.f32 %v1230, %v1456
        %v1476 = vadd.f32 %v1231, %v1458
        %v1477 = vadd.f32 %v1232, %v1461
        %v1478 = vadd.f32 %v1233, %v1463
        %v1479 = vadd.f32 %v1234, %v1466
        %v1480 = vadd.f32 %v1235, %v1468
        %v1481 = vadd.f32 %v1236, %v1471
        %v1482 = vadd.f32 %v1237, %v1473
        %v1483 = vld [vmem:[%s380] sm:$0xe]
        %v1484 = vld [vmem:[%s380 + $0x8] sm:$0xe]
        %v1485 = vld [vmem:[%s380 + $0x10] sm:$0xe]
        %v1486 = vld [vmem:[%s380 + $0x18] sm:$0xe]
        %v1487 = vld [vmem:[%s380 + $0x20] sm:$0xe]
        %v1488 = vld [vmem:[%s380 + $0x28] sm:$0xe]
        %v1489 = vld [vmem:[%s380 + $0x30] sm:$0xe]
        %v1490 = vld [vmem:[%s380 + $0x38] sm:$0xe]
        %v1507 = vrot.slane %v1483, 5
        %v1508 = vrot.slane %v1507, 4
        %v1509 = vrot.slane %v1239, 5
        %v1510 = vsel %vm955, %v1508, %v1509
        %v1511 = vrot.slane %v1484, 5
        %v1512 = vrot.slane %v1511, 4
        %v1513 = vrot.slane %v1241, 5
        %v1514 = vsel %vm955, %v1512, %v1513
        %v1515 = vrot.slane %v1485, 5
        %v1516 = vrot.slane %v1515, 4
        %v1517 = vrot.slane %v1243, 5
        %v1518 = vsel %vm955, %v1516, %v1517
        %v1519 = vrot.slane %v1486, 5
        %v1520 = vrot.slane %v1519, 4
        %v1521 = vrot.slane %v1245, 5
        %v1522 = vsel %vm955, %v1520, %v1521
        %v1523 = vrot.slane %v1487, 5
        %v1524 = vrot.slane %v1523, 4
        %v1525 = vrot.slane %v1247, 5
        %v1526 = vsel %vm955, %v1524, %v1525
        %v1527 = vrot.slane %v1488, 5
        %v1528 = vrot.slane %v1527, 4
        %v1529 = vrot.slane %v1249, 5
        %v1530 = vsel %vm955, %v1528, %v1529
        %v1531 = vrot.slane %v1489, 5
        %v1532 = vrot.slane %v1531, 4
        %v1533 = vrot.slane %v1251, 5
        %v1534 = vsel %vm955, %v1532, %v1533
        %v1535 = vrot.slane %v1490, 5
        %v1536 = vrot.slane %v1535, 4
        %v1537 = vrot.slane %v1253, 5
        %v1538 = vsel %vm955, %v1536, %v1537
        %v1539 = vld [vmem:[#allocation8 + $0x140] sm:$0xf]
        %v1540 = vld [vmem:[#allocation8 + $0x144] sm:$0xf]
        %v1541 = vld [vmem:[#allocation8 + $0x148] sm:$0xf]
        %v1542 = vld [vmem:[#allocation8 + $0x14c] sm:$0xf]
        %v1543 = vld [vmem:[#allocation8 + $0x150] sm:$0xf]
        %v1544 = vld [vmem:[#allocation8 + $0x154] sm:$0xf]
        %v1545 = vld [vmem:[#allocation8 + $0x158] sm:$0xf]
        %v1546 = vld [vmem:[#allocation8 + $0x15c] sm:$0xf]
        %v1547 = vld [vmem:[#allocation8 + $0x160] sm:$0xf]
        %v1548 = vld [vmem:[#allocation8 + $0x164] sm:$0xf]
        %v1549 = vld [vmem:[#allocation8 + $0x168] sm:$0xf]
        %v1550 = vld [vmem:[#allocation8 + $0x16c] sm:$0xf]
        %v1551 = vld [vmem:[#allocation8 + $0x170] sm:$0xf]
        %v1552 = vld [vmem:[#allocation8 + $0x174] sm:$0xf]
        %v1553 = vld [vmem:[#allocation8 + $0x178] sm:$0xf]
        %v1554 = vld [vmem:[#allocation8 + $0x17c] sm:$0xf]
        %v1555 = vunpack.c.l.b16 %v1510
        %v1556 = vunpack.c.l.b16 %v1514
        %v1557 = vunpack.c.l.b16 %v1518
        %v1558 = vunpack.c.l.b16 %v1522
        %v1559 = vunpack.c.l.b16 %v1526
        %v1560 = vunpack.c.l.b16 %v1530
        %v1561 = vunpack.c.l.b16 %v1534
        %v1562 = vunpack.c.l.b16 %v1538
        %v1563 = vpack.c.b16 %v1556, %v1555
        %v1564 = vpack.c.b16 %v1558, %v1557
        %v1565 = vpack.c.b16 %v1560, %v1559
        %v1566 = vpack.c.b16 %v1562, %v1561
        %v1587 = vunpack.c.l.b16 %v1539
        %v1588 = vunpack.c.l.b16 %v1540
        %v1589 = vunpack.c.l.b16 %v1541
        %v1590 = vunpack.c.l.b16 %v1542
        %v1591 = vunpack.c.l.b16 %v1543
        %v1592 = vunpack.c.l.b16 %v1544
        %v1593 = vunpack.c.l.b16 %v1545
        %v1594 = vunpack.c.l.b16 %v1546
        %v1595 = vunpack.c.l.b16 %v1547
        %v1596 = vunpack.c.l.b16 %v1548
        %v1597 = vunpack.c.l.b16 %v1549
        %v1598 = vunpack.c.l.b16 %v1550
        %v1599 = vunpack.c.l.b16 %v1551
        %v1600 = vunpack.c.l.b16 %v1552
        %v1601 = vunpack.c.l.b16 %v1553
        %v1602 = vunpack.c.l.b16 %v1554
        %v1603 = vpack.c.b16 %v1588, %v1587
        %v1604 = vpack.c.b16 %v1590, %v1589
        %v1605 = vpack.c.b16 %v1592, %v1591
        %v1606 = vpack.c.b16 %v1594, %v1593
        %v1607 = vpack.c.b16 %v1596, %v1595
        %v1608 = vpack.c.b16 %v1598, %v1597
        %v1609 = vpack.c.b16 %v1600, %v1599
        %v1610 = vpack.c.b16 %v1602, %v1601
        %1619 = vmatpush.bf16.msra.mxu0 %v1610
        %1620 = vmatpush.bf16.msra.mxu0 %v1609
        %1621 = vmatpush.bf16.msra.mxu0 %v1608
        %1622 = vmatpush.bf16.msra.mxu0 %v1607
        %1623 = vmatpush.bf16.msra.mxu0 %v1606
        %1624 = vmatpush.bf16.msra.mxu0 %v1605
        %1625 = vmatpush.bf16.msra.mxu0 %v1604
        %1626 = vmatpush.bf16.msra.mxu0 %v1603
        %1627 = vmatmul.bf16.gmra.mxu0 %v1563
        %v1628 = vpop.f32.mrf.mxu0
        %v1629 = vadd.f32 0.0, %v1628
        %v1630 = vpop.f32.mrf.mxu0
        %v1631 = vadd.f32 0.0, %v1630
        %1632 = vmatmul.bf16.gmra.mxu0 %v1564
        %v1633 = vpop.f32.mrf.mxu0
        %v1634 = vadd.f32 0.0, %v1633
        %v1635 = vpop.f32.mrf.mxu0
        %v1636 = vadd.f32 0.0, %v1635
        %1637 = vmatmul.bf16.gmra.mxu0 %v1565
        %v1638 = vpop.f32.mrf.mxu0
        %v1639 = vadd.f32 0.0, %v1638
        %v1640 = vpop.f32.mrf.mxu0
        %v1641 = vadd.f32 0.0, %v1640
        %1642 = vmatmul.bf16.gmra.mxu0 %v1566
        %v1643 = vpop.f32.mrf.mxu0
        %v1644 = vadd.f32 0.0, %v1643
        %v1645 = vpop.f32.mrf.mxu0
        %v1646 = vadd.f32 0.0, %v1645
        %1647 = vdwg.mxu0
        %v1648 = vadd.f32 %v1475, %v1629
        %v1649 = vadd.f32 %v1476, %v1631
        %v1650 = vadd.f32 %v1477, %v1634
        %v1651 = vadd.f32 %v1478, %v1636
        %v1652 = vadd.f32 %v1479, %v1639
        %v1653 = vadd.f32 %v1480, %v1641
        %v1654 = vadd.f32 %v1481, %v1644
        %v1655 = vadd.f32 %v1482, %v1646
        %s1656 = scalar_lea.vmem [#allocation2], 16
        %v1657 = vld [vmem:[%s1656] sm:$0xf]
        %v1658 = vld [vmem:[%s1656 + $0x8] sm:$0xf]
        %v1659 = vld [vmem:[%s1656 + $0x10] sm:$0xf]
        %v1660 = vld [vmem:[%s1656 + $0x18] sm:$0xf]
        %v1661 = vld [vmem:[%s1656 + $0x20] sm:$0xf]
        %v1662 = vld [vmem:[%s1656 + $0x28] sm:$0xf]
        %v1663 = vld [vmem:[%s1656 + $0x30] sm:$0xf]
        %v1664 = vld [vmem:[%s1656 + $0x38] sm:$0xf]
        %v1665 = vld [vmem:[#allocation8 + $0x180] sm:$0xf]
        %v1666 = vld [vmem:[#allocation8 + $0x184] sm:$0xf]
        %v1667 = vld [vmem:[#allocation8 + $0x188] sm:$0xf]
        %v1668 = vld [vmem:[#allocation8 + $0x18c] sm:$0xf]
        %v1669 = vld [vmem:[#allocation8 + $0x190] sm:$0xf]
        %v1670 = vld [vmem:[#allocation8 + $0x194] sm:$0xf]
        %v1671 = vld [vmem:[#allocation8 + $0x198] sm:$0xf]
        %v1672 = vld [vmem:[#allocation8 + $0x19c] sm:$0xf]
        %v1673 = vld [vmem:[#allocation8 + $0x1a0] sm:$0xf]
        %v1674 = vld [vmem:[#allocation8 + $0x1a4] sm:$0xf]
        %v1675 = vld [vmem:[#allocation8 + $0x1a8] sm:$0xf]
        %v1676 = vld [vmem:[#allocation8 + $0x1ac] sm:$0xf]
        %v1677 = vld [vmem:[#allocation8 + $0x1b0] sm:$0xf]
        %v1678 = vld [vmem:[#allocation8 + $0x1b4] sm:$0xf]
        %v1679 = vld [vmem:[#allocation8 + $0x1b8] sm:$0xf]
        %v1680 = vld [vmem:[#allocation8 + $0x1bc] sm:$0xf]
        %v1689 = vunpack.c.l.b16 %v1657
        %v1690 = vunpack.c.l.b16 %v1658
        %v1691 = vunpack.c.l.b16 %v1659
        %v1692 = vunpack.c.l.b16 %v1660
        %v1693 = vunpack.c.l.b16 %v1661
        %v1694 = vunpack.c.l.b16 %v1662
        %v1695 = vunpack.c.l.b16 %v1663
        %v1696 = vunpack.c.l.b16 %v1664
        %v1697 = vpack.c.b16 %v1690, %v1689
        %v1698 = vpack.c.b16 %v1692, %v1691
        %v1699 = vpack.c.b16 %v1694, %v1693
        %v1700 = vpack.c.b16 %v1696, %v1695
        %v1721 = vunpack.c.l.b16 %v1665
        %v1722 = vunpack.c.l.b16 %v1666
        %v1723 = vunpack.c.l.b16 %v1667
        %v1724 = vunpack.c.l.b16 %v1668
        %v1725 = vunpack.c.l.b16 %v1669
        %v1726 = vunpack.c.l.b16 %v1670
        %v1727 = vunpack.c.l.b16 %v1671
        %v1728 = vunpack.c.l.b16 %v1672
        %v1729 = vunpack.c.l.b16 %v1673
        %v1730 = vunpack.c.l.b16 %v1674
        %v1731 = vunpack.c.l.b16 %v1675
        %v1732 = vunpack.c.l.b16 %v1676
        %v1733 = vunpack.c.l.b16 %v1677
        %v1734 = vunpack.c.l.b16 %v1678
        %v1735 = vunpack.c.l.b16 %v1679
        %v1736 = vunpack.c.l.b16 %v1680
        %v1737 = vpack.c.b16 %v1722, %v1721
        %v1738 = vpack.c.b16 %v1724, %v1723
        %v1739 = vpack.c.b16 %v1726, %v1725
        %v1740 = vpack.c.b16 %v1728, %v1727
        %v1741 = vpack.c.b16 %v1730, %v1729
        %v1742 = vpack.c.b16 %v1732, %v1731
        %v1743 = vpack.c.b16 %v1734, %v1733
        %v1744 = vpack.c.b16 %v1736, %v1735
        %1753 = vmatpush.bf16.msra.mxu0 %v1744
        %1754 = vmatpush.bf16.msra.mxu0 %v1743
        %1755 = vmatpush.bf16.msra.mxu0 %v1742
        %1756 = vmatpush.bf16.msra.mxu0 %v1741
        %1757 = vmatpush.bf16.msra.mxu0 %v1740
        %1758 = vmatpush.bf16.msra.mxu0 %v1739
        %1759 = vmatpush.bf16.msra.mxu0 %v1738
        %1760 = vmatpush.bf16.msra.mxu0 %v1737
        %1761 = vmatmul.bf16.gmra.mxu0 %v1697
        %v1762 = vpop.f32.mrf.mxu0
        %v1763 = vadd.f32 0.0, %v1762
        %v1764 = vpop.f32.mrf.mxu0
        %v1765 = vadd.f32 0.0, %v1764
        %1766 = vmatmul.bf16.gmra.mxu0 %v1698
        %v1767 = vpop.f32.mrf.mxu0
        %v1768 = vadd.f32 0.0, %v1767
        %v1769 = vpop.f32.mrf.mxu0
        %v1770 = vadd.f32 0.0, %v1769
        %1771 = vmatmul.bf16.gmra.mxu0 %v1699
        %v1772 = vpop.f32.mrf.mxu0
        %v1773 = vadd.f32 0.0, %v1772
        %v1774 = vpop.f32.mrf.mxu0
        %v1775 = vadd.f32 0.0, %v1774
        %1776 = vmatmul.bf16.gmra.mxu0 %v1700
        %v1777 = vpop.f32.mrf.mxu0
        %v1778 = vadd.f32 0.0, %v1777
        %v1779 = vpop.f32.mrf.mxu0
        %v1780 = vadd.f32 0.0, %v1779
        %1781 = vdwg.mxu0
        %v1782 = vadd.f32 %v1648, %v1763
        %v1783 = vadd.f32 %v1649, %v1765
        %v1784 = vadd.f32 %v1650, %v1768
        %v1785 = vadd.f32 %v1651, %v1770
        %v1786 = vadd.f32 %v1652, %v1773
        %v1787 = vadd.f32 %v1653, %v1775
        %v1788 = vadd.f32 %v1654, %v1778
        %v1789 = vadd.f32 %v1655, %v1780
        %v1790 = vld [vmem:[%s1656] sm:$0xf]
        %v1791 = vld [vmem:[%s1656 + $0x4] sm:$0x1]
        %v1792 = vld [vmem:[%s1656 + $0x8] sm:$0xf]
        %v1793 = vld [vmem:[%s1656 + $0xc] sm:$0x1]
        %v1794 = vld [vmem:[%s1656 + $0x10] sm:$0xf]
        %v1795 = vld [vmem:[%s1656 + $0x14] sm:$0x1]
        %v1796 = vld [vmem:[%s1656 + $0x18] sm:$0xf]
        %v1797 = vld [vmem:[%s1656 + $0x1c] sm:$0x1]
        %v1798 = vld [vmem:[%s1656 + $0x20] sm:$0xf]
        %v1799 = vld [vmem:[%s1656 + $0x24] sm:$0x1]
        %v1800 = vld [vmem:[%s1656 + $0x28] sm:$0xf]
        %v1801 = vld [vmem:[%s1656 + $0x2c] sm:$0x1]
        %v1802 = vld [vmem:[%s1656 + $0x30] sm:$0xf]
        %v1803 = vld [vmem:[%s1656 + $0x34] sm:$0x1]
        %v1804 = vld [vmem:[%s1656 + $0x38] sm:$0xf]
        %v1805 = vld [vmem:[%s1656 + $0x3c] sm:$0x1]
        %v1807 = vshrl.u32 %v1790, 16
        %v1809 = vrot.slane %v1807, 4
        %v1810 = vshll.u32 %v1790, 16
        %v1812 = vrot.slane %v1810, 5
        %v1813 = vor.u32 %v1809, %v1812
        %v1814 = vrot.slane %v1813, 4
        %v1816 = vshll.u32 %v1791, 16
        %v1818 = vrot.slane %v1816, 5
        %v1819 = vsel %vm606, %v1814, %v1818
        %v1821 = vshrl.u32 %v1792, 16
        %v1823 = vrot.slane %v1821, 4
        %v1824 = vshll.u32 %v1792, 16
        %v1826 = vrot.slane %v1824, 5
        %v1827 = vor.u32 %v1823, %v1826
        %v1828 = vrot.slane %v1827, 4
        %v1830 = vshll.u32 %v1793, 16
        %v1832 = vrot.slane %v1830, 5
        %v1833 = vsel %vm606, %v1828, %v1832
        %v1835 = vshrl.u32 %v1794, 16
        %v1837 = vrot.slane %v1835, 4
        %v1838 = vshll.u32 %v1794, 16
        %v1840 = vrot.slane %v1838, 5
        %v1841 = vor.u32 %v1837, %v1840
        %v1842 = vrot.slane %v1841, 4
        %v1844 = vshll.u32 %v1795, 16
        %v1846 = vrot.slane %v1844, 5
        %v1847 = vsel %vm606, %v1842, %v1846
        %v1849 = vshrl.u32 %v1796, 16
        %v1851 = vrot.slane %v1849, 4
        %v1852 = vshll.u32 %v1796, 16
        %v1854 = vrot.slane %v1852, 5
        %v1855 = vor.u32 %v1851, %v1854
        %v1856 = vrot.slane %v1855, 4
        %v1858 = vshll.u32 %v1797, 16
        %v1860 = vrot.slane %v1858, 5
        %v1861 = vsel %vm606, %v1856, %v1860
        %v1863 = vshrl.u32 %v1798, 16
        %v1865 = vrot.slane %v1863, 4
        %v1866 = vshll.u32 %v1798, 16
        %v1868 = vrot.slane %v1866, 5
        %v1869 = vor.u32 %v1865, %v1868
        %v1870 = vrot.slane %v1869, 4
        %v1872 = vshll.u32 %v1799, 16
        %v1874 = vrot.slane %v1872, 5
        %v1875 = vsel %vm606, %v1870, %v1874
        %v1877 = vshrl.u32 %v1800, 16
        %v1879 = vrot.slane %v1877, 4
        %v1880 = vshll.u32 %v1800, 16
        %v1882 = vrot.slane %v1880, 5
        %v1883 = vor.u32 %v1879, %v1882
        %v1884 = vrot.slane %v1883, 4
        %v1886 = vshll.u32 %v1801, 16
        %v1888 = vrot.slane %v1886, 5
        %v1889 = vsel %vm606, %v1884, %v1888
        %v1891 = vshrl.u32 %v1802, 16
        %v1893 = vrot.slane %v1891, 4
        %v1894 = vshll.u32 %v1802, 16
        %v1896 = vrot.slane %v1894, 5
        %v1897 = vor.u32 %v1893, %v1896
        %v1898 = vrot.slane %v1897, 4
        %v1900 = vshll.u32 %v1803, 16
        %v1902 = vrot.slane %v1900, 5
        %v1903 = vsel %vm606, %v1898, %v1902
        %v1905 = vshrl.u32 %v1804, 16
        %v1907 = vrot.slane %v1905, 4
        %v1908 = vshll.u32 %v1804, 16
        %v1910 = vrot.slane %v1908, 5
        %v1911 = vor.u32 %v1907, %v1910
        %v1912 = vrot.slane %v1911, 4
        %v1914 = vshll.u32 %v1805, 16
        %v1916 = vrot.slane %v1914, 5
        %v1917 = vsel %vm606, %v1912, %v1916
        %v1918 = vld [vmem:[#allocation8 + $0x1c0] sm:$0xf]
        %v1919 = vld [vmem:[#allocation8 + $0x1c4] sm:$0xf]
        %v1920 = vld [vmem:[#allocation8 + $0x1c8] sm:$0xf]
        %v1921 = vld [vmem:[#allocation8 + $0x1cc] sm:$0xf]
        %v1922 = vld [vmem:[#allocation8 + $0x1d0] sm:$0xf]
        %v1923 = vld [vmem:[#allocation8 + $0x1d4] sm:$0xf]
        %v1924 = vld [vmem:[#allocation8 + $0x1d8] sm:$0xf]
        %v1925 = vld [vmem:[#allocation8 + $0x1dc] sm:$0xf]
        %v1926 = vld [vmem:[#allocation8 + $0x1e0] sm:$0xf]
        %v1927 = vld [vmem:[#allocation8 + $0x1e4] sm:$0xf]
        %v1928 = vld [vmem:[#allocation8 + $0x1e8] sm:$0xf]
        %v1929 = vld [vmem:[#allocation8 + $0x1ec] sm:$0xf]
        %v1930 = vld [vmem:[#allocation8 + $0x1f0] sm:$0xf]
        %v1931 = vld [vmem:[#allocation8 + $0x1f4] sm:$0xf]
        %v1932 = vld [vmem:[#allocation8 + $0x1f8] sm:$0xf]
        %v1933 = vld [vmem:[#allocation8 + $0x1fc] sm:$0xf]
        %v1934 = vunpack.c.l.b16 %v1819
        %v1935 = vunpack.c.l.b16 %v1833
        %v1936 = vunpack.c.l.b16 %v1847
        %v1937 = vunpack.c.l.b16 %v1861
        %v1938 = vunpack.c.l.b16 %v1875
        %v1939 = vunpack.c.l.b16 %v1889
        %v1940 = vunpack.c.l.b16 %v1903
        %v1941 = vunpack.c.l.b16 %v1917
        %v1942 = vpack.c.b16 %v1935, %v1934
        %v1943 = vpack.c.b16 %v1937, %v1936
        %v1944 = vpack.c.b16 %v1939, %v1938
        %v1945 = vpack.c.b16 %v1941, %v1940
        %v1966 = vunpack.c.l.b16 %v1918
        %v1967 = vunpack.c.l.b16 %v1919
        %v1968 = vunpack.c.l.b16 %v1920
        %v1969 = vunpack.c.l.b16 %v1921
        %v1970 = vunpack.c.l.b16 %v1922
        %v1971 = vunpack.c.l.b16 %v1923
        %v1972 = vunpack.c.l.b16 %v1924
        %v1973 = vunpack.c.l.b16 %v1925
        %v1974 = vunpack.c.l.b16 %v1926
        %v1975 = vunpack.c.l.b16 %v1927
        %v1976 = vunpack.c.l.b16 %v1928
        %v1977 = vunpack.c.l.b16 %v1929
        %v1978 = vunpack.c.l.b16 %v1930
        %v1979 = vunpack.c.l.b16 %v1931
        %v1980 = vunpack.c.l.b16 %v1932
        %v1981 = vunpack.c.l.b16 %v1933
        %v1982 = vpack.c.b16 %v1967, %v1966
        %v1983 = vpack.c.b16 %v1969, %v1968
        %v1984 = vpack.c.b16 %v1971, %v1970
        %v1985 = vpack.c.b16 %v1973, %v1972
        %v1986 = vpack.c.b16 %v1975, %v1974
        %v1987 = vpack.c.b16 %v1977, %v1976
        %v1988 = vpack.c.b16 %v1979, %v1978
        %v1989 = vpack.c.b16 %v1981, %v1980
        %1998 = vmatpush.bf16.msra.mxu0 %v1989
        %1999 = vmatpush.bf16.msra.mxu0 %v1988
        %2000 = vmatpush.bf16.msra.mxu0 %v1987
        %2001 = vmatpush.bf16.msra.mxu0 %v1986
        %2002 = vmatpush.bf16.msra.mxu0 %v1985
        %2003 = vmatpush.bf16.msra.mxu0 %v1984
        %2004 = vmatpush.bf16.msra.mxu0 %v1983
        %2005 = vmatpush.bf16.msra.mxu0 %v1982
        %2006 = vmatmul.bf16.gmra.mxu0 %v1942
        %v2007 = vpop.f32.mrf.mxu0
        %v2008 = vadd.f32 0.0, %v2007
        %v2009 = vpop.f32.mrf.mxu0
        %v2010 = vadd.f32 0.0, %v2009
        %2011 = vmatmul.bf16.gmra.mxu0 %v1943
        %v2012 = vpop.f32.mrf.mxu0
        %v2013 = vadd.f32 0.0, %v2012
        %v2014 = vpop.f32.mrf.mxu0
        %v2015 = vadd.f32 0.0, %v2014
        %2016 = vmatmul.bf16.gmra.mxu0 %v1944
        %v2017 = vpop.f32.mrf.mxu0
        %v2018 = vadd.f32 0.0, %v2017
        %v2019 = vpop.f32.mrf.mxu0
        %v2020 = vadd.f32 0.0, %v2019
        %2021 = vmatmul.bf16.gmra.mxu0 %v1945
        %v2022 = vpop.f32.mrf.mxu0
        %v2023 = vadd.f32 0.0, %v2022
        %v2024 = vpop.f32.mrf.mxu0
        %v2025 = vadd.f32 0.0, %v2024
        %2026 = vdwg.mxu0
        %v2027 = vadd.f32 %v1782, %v2008
        %v2028 = vadd.f32 %v1783, %v2010
        %v2029 = vadd.f32 %v1784, %v2013
        %v2030 = vadd.f32 %v1785, %v2015
        %v2031 = vadd.f32 %v1786, %v2018
        %v2032 = vadd.f32 %v1787, %v2020
        %v2033 = vadd.f32 %v1788, %v2023
        %v2034 = vadd.f32 %v1789, %v2025
        %v2035 = vld [vmem:[%s1656] sm:$0xe]
        %v2036 = vld [vmem:[%s1656 + $0x8] sm:$0xe]
        %v2037 = vld [vmem:[%s1656 + $0x10] sm:$0xe]
        %v2038 = vld [vmem:[%s1656 + $0x18] sm:$0xe]
        %v2039 = vld [vmem:[%s1656 + $0x20] sm:$0xe]
        %v2040 = vld [vmem:[%s1656 + $0x28] sm:$0xe]
        %v2041 = vld [vmem:[%s1656 + $0x30] sm:$0xe]
        %v2042 = vld [vmem:[%s1656 + $0x38] sm:$0xe]
        %v2059 = vrot.slane %v2035, 5
        %v2060 = vrot.slane %v2059, 4
        %v2061 = vrot.slane %v1791, 5
        %v2062 = vsel %vm955, %v2060, %v2061
        %v2063 = vrot.slane %v2036, 5
        %v2064 = vrot.slane %v2063, 4
        %v2065 = vrot.slane %v1793, 5
        %v2066 = vsel %vm955, %v2064, %v2065
        %v2067 = vrot.slane %v2037, 5
        %v2068 = vrot.slane %v2067, 4
        %v2069 = vrot.slane %v1795, 5
        %v2070 = vsel %vm955, %v2068, %v2069
        %v2071 = vrot.slane %v2038, 5
        %v2072 = vrot.slane %v2071, 4
        %v2073 = vrot.slane %v1797, 5
        %v2074 = vsel %vm955, %v2072, %v2073
        %v2075 = vrot.slane %v2039, 5
        %v2076 = vrot.slane %v2075, 4
        %v2077 = vrot.slane %v1799, 5
        %v2078 = vsel %vm955, %v2076, %v2077
        %v2079 = vrot.slane %v2040, 5
        %v2080 = vrot.slane %v2079, 4
        %v2081 = vrot.slane %v1801, 5
        %v2082 = vsel %vm955, %v2080, %v2081
        %v2083 = vrot.slane %v2041, 5
        %v2084 = vrot.slane %v2083, 4
        %v2085 = vrot.slane %v1803, 5
        %v2086 = vsel %vm955, %v2084, %v2085
        %v2087 = vrot.slane %v2042, 5
        %v2088 = vrot.slane %v2087, 4
        %v2089 = vrot.slane %v1805, 5
        %v2090 = vsel %vm955, %v2088, %v2089
        %v2091 = vld [vmem:[#allocation8 + $0x200] sm:$0xf]
        %v2092 = vld [vmem:[#allocation8 + $0x204] sm:$0xf]
        %v2093 = vld [vmem:[#allocation8 + $0x208] sm:$0xf]
        %v2094 = vld [vmem:[#allocation8 + $0x20c] sm:$0xf]
        %v2095 = vld [vmem:[#allocation8 + $0x210] sm:$0xf]
        %v2096 = vld [vmem:[#allocation8 + $0x214] sm:$0xf]
        %v2097 = vld [vmem:[#allocation8 + $0x218] sm:$0xf]
        %v2098 = vld [vmem:[#allocation8 + $0x21c] sm:$0xf]
        %v2099 = vld [vmem:[#allocation8 + $0x220] sm:$0xf]
        %v2100 = vld [vmem:[#allocation8 + $0x224] sm:$0xf]
        %v2101 = vld [vmem:[#allocation8 + $0x228] sm:$0xf]
        %v2102 = vld [vmem:[#allocation8 + $0x22c] sm:$0xf]
        %v2103 = vld [vmem:[#allocation8 + $0x230] sm:$0xf]
        %v2104 = vld [vmem:[#allocation8 + $0x234] sm:$0xf]
        %v2105 = vld [vmem:[#allocation8 + $0x238] sm:$0xf]
        %v2106 = vld [vmem:[#allocation8 + $0x23c] sm:$0xf]
        %v2107 = vunpack.c.l.b16 %v2062
        %v2108 = vunpack.c.l.b16 %v2066
        %v2109 = vunpack.c.l.b16 %v2070
        %v2110 = vunpack.c.l.b16 %v2074
        %v2111 = vunpack.c.l.b16 %v2078
        %v2112 = vunpack.c.l.b16 %v2082
        %v2113 = vunpack.c.l.b16 %v2086
        %v2114 = vunpack.c.l.b16 %v2090
        %v2115 = vpack.c.b16 %v2108, %v2107
        %v2116 = vpack.c.b16 %v2110, %v2109
        %v2117 = vpack.c.b16 %v2112, %v2111
        %v2118 = vpack.c.b16 %v2114, %v2113
        %v2139 = vunpack.c.l.b16 %v2091
        %v2140 = vunpack.c.l.b16 %v2092
        %v2141 = vunpack.c.l.b16 %v2093
        %v2142 = vunpack.c.l.b16 %v2094
        %v2143 = vunpack.c.l.b16 %v2095
        %v2144 = vunpack.c.l.b16 %v2096
        %v2145 = vunpack.c.l.b16 %v2097
        %v2146 = vunpack.c.l.b16 %v2098
        %v2147 = vunpack.c.l.b16 %v2099
        %v2148 = vunpack.c.l.b16 %v2100
        %v2149 = vunpack.c.l.b16 %v2101
        %v2150 = vunpack.c.l.b16 %v2102
        %v2151 = vunpack.c.l.b16 %v2103
        %v2152 = vunpack.c.l.b16 %v2104
        %v2153 = vunpack.c.l.b16 %v2105
        %v2154 = vunpack.c.l.b16 %v2106
        %v2155 = vpack.c.b16 %v2140, %v2139
        %v2156 = vpack.c.b16 %v2142, %v2141
        %v2157 = vpack.c.b16 %v2144, %v2143
        %v2158 = vpack.c.b16 %v2146, %v2145
        %v2159 = vpack.c.b16 %v2148, %v2147
        %v2160 = vpack.c.b16 %v2150, %v2149
        %v2161 = vpack.c.b16 %v2152, %v2151
        %v2162 = vpack.c.b16 %v2154, %v2153
        %2171 = vmatpush.bf16.msra.mxu0 %v2162
        %2172 = vmatpush.bf16.msra.mxu0 %v2161
        %2173 = vmatpush.bf16.msra.mxu0 %v2160
        %2174 = vmatpush.bf16.msra.mxu0 %v2159
        %2175 = vmatpush.bf16.msra.mxu0 %v2158
        %2176 = vmatpush.bf16.msra.mxu0 %v2157
        %2177 = vmatpush.bf16.msra.mxu0 %v2156
        %2178 = vmatpush.bf16.msra.mxu0 %v2155
        %2179 = vmatmul.bf16.gmra.mxu0 %v2115
        %v2180 = vpop.f32.mrf.mxu0
        %v2181 = vadd.f32 0.0, %v2180
        %v2182 = vpop.f32.mrf.mxu0
        %v2183 = vadd.f32 0.0, %v2182
        %2184 = vmatmul.bf16.gmra.mxu0 %v2116
        %v2185 = vpop.f32.mrf.mxu0
        %v2186 = vadd.f32 0.0, %v2185
        %v2187 = vpop.f32.mrf.mxu0
        %v2188 = vadd.f32 0.0, %v2187
        %2189 = vmatmul.bf16.gmra.mxu0 %v2117
        %v2190 = vpop.f32.mrf.mxu0
        %v2191 = vadd.f32 0.0, %v2190
        %v2192 = vpop.f32.mrf.mxu0
        %v2193 = vadd.f32 0.0, %v2192
        %2194 = vmatmul.bf16.gmra.mxu0 %v2118
        %v2195 = vpop.f32.mrf.mxu0
        %v2196 = vadd.f32 0.0, %v2195
        %v2197 = vpop.f32.mrf.mxu0
        %v2198 = vadd.f32 0.0, %v2197
        %2199 = vdwg.mxu0
        %v2200 = vadd.f32 %v2027, %v2181
        %v2201 = vadd.f32 %v2028, %v2183
        %v2202 = vadd.f32 %v2029, %v2186
        %v2203 = vadd.f32 %v2030, %v2188
        %v2204 = vadd.f32 %v2031, %v2191
        %v2205 = vadd.f32 %v2032, %v2193
        %v2206 = vadd.f32 %v2033, %v2196
        %v2207 = vadd.f32 %v2034, %v2198
        %v2208 = vld [vmem:[%s3 + $0x1] sm:$0x1]
        %v2209 = vperm.slane %v2208, 0
        %v2210 = vadd.f32 %v2200, %v2209
        %v2211 = vadd.f32 %v2201, %v2209
        %v2212 = vadd.f32 %v2202, %v2209
        %v2213 = vadd.f32 %v2203, %v2209
        %v2214 = vadd.f32 %v2204, %v2209
        %v2215 = vadd.f32 %v2205, %v2209
        %v2216 = vadd.f32 %v2206, %v2209
        %v2217 = vadd.f32 %v2207, %v2209
        %v2218 = vmax.f32 %v2210, 0.0
        %v2219 = vmax.f32 %v2211, 0.0
        %v2220 = vmax.f32 %v2212, 0.0
        %v2221 = vmax.f32 %v2213, 0.0
        %v2222 = vmax.f32 %v2214, 0.0
        %v2223 = vmax.f32 %v2215, 0.0
        %v2224 = vmax.f32 %v2216, 0.0
        %v2225 = vmax.f32 %v2217, 0.0
        %2226 = vst [vmem:[%s250] sm:$0xff] %v2218
        %2227 = vst [vmem:[%s250 + $0x8] sm:$0xff] %v2219
        %2228 = vst [vmem:[%s250 + $0x10] sm:$0xff] %v2220
        %2229 = vst [vmem:[%s250 + $0x18] sm:$0xff] %v2221
        %2230 = vst [vmem:[%s250 + $0x20] sm:$0xff] %v2222
        %2231 = vst [vmem:[%s250 + $0x28] sm:$0xff] %v2223
        %2232 = vst [vmem:[%s250 + $0x30] sm:$0xff] %v2224
        %2233 = vst [vmem:[%s250 + $0x38] sm:$0xff] %v2225
        %s2234 = sand.u32 %s119, 1
        %s2235 = scalar_lea.sflag [#allocation5], %s2234
        %s2236 = sand.u32 %s119, 1
        %s2237 = smul.addr %s2236, 64
        %s2238 = scalar_lea.vmem [#allocation9], %s2237
        // Predicated region
        $region49: #{tpu_custom_call.1} parent=35 // pred_check
          %p2239 = pneg %p129
        $region50: #{tpu_custom_call.1} parent=35 // pred_check_branch
          %2241 = sbr.rel (%p2239) target = $region52
        $region51: #{tpu_custom_call.1} parent=35 // pred_region
          %2243 = vsyncadd %s2235, 0
          %s2244 = smul.addr %s22, 8
          %s2245 = smul.addr %s2244, 8
          %s2246 = scalar_lea.hbm %s4, %s2245
          %s2247 = sshll.u32 %s2238, 4
          %s2248 = int_to_ptr.vmem [resolvable:$true] %s2247
          %s2249 = sshll.u32 %s2246, 4
          %s2250 = int_to_ptr.hbm [resolvable:$true] %s2249
          %2255 = dma.vmem_to_hbm [thread:$0]  %s2248, 1024, %s2250, %s2235, 128, 128, 8
        $region52: #{tpu_custom_call.1} parent=35 // pred_fallthru
          _
      $region36: #{tpu_custom_call.1} parent=5 // pred_fallthru
        _
      %p2256 = scmp.le.s32.totalorder 2, %s17
      // Predicated region
      $region53: #{tpu_custom_call.1} parent=5 // pred_check
        %p2257 = pneg %p2256
      $region54: #{tpu_custom_call.1} parent=5 // pred_check_branch
        %2259 = sbr.rel (%p2257) target = $region56
      $region55: #{tpu_custom_call.1} parent=5 // pred_region
        %s2260 = ssub.s32 %s17, 2
        // Predicated region
        $region57: #{tpu_custom_call.1} parent=55 // pred_check
          %p2261 = pneg %p135
        $region58: #{tpu_custom_call.1} parent=55 // pred_check_branch
          %2263 = sbr.rel (%p2261) target = $region60
        $region59: #{tpu_custom_call.1} parent=55 // pred_region
          %s2264 = sand.u32 %s120, 1
          %s2265 = scalar_lea.sflag [#allocation5], %s2264
          %s2266 = sand.u32 %s120, 1
          %s2267 = smul.addr %s2266, 64
          %s2268 = scalar_lea.vmem [#allocation9], %s2267
          %2270 = dma.done %s2265, 1024
        $region60: #{tpu_custom_call.1} parent=55 // pred_fallthru
          _
      $region56: #{tpu_custom_call.1} parent=5 // pred_fallthru
        _
    $region6: #{tpu_custom_call.1} parent=1 // loop_footer
      %s21 = sadd.s32 1, %s17
    $region7: #{tpu_custom_call.1} parent=1 // loop_footer_branch
      %16 = sbr.rel target = $region3
    $region8: #{tpu_custom_call.1} parent=1 // loop_exit
      _
    %2271 = vsyncpa [#allocation4], 1
    %s2272 = scalar_lea.sflag [#allocation4], 1
    %2273 = vsyncpa %s2272, 1
    %2274 = vsyncpa [#allocation7], 1
    %2275 = vsyncpa [#allocation5], 1
    %s2276 = scalar_lea.sflag [#allocation5], 1
    %2277 = vsyncpa %s2276, 1

</llo_original>
